<compile_context>
chip_gen: v5e
topology: v5e:2x2
jax: 0.10.0
libtpu: 0.0.40
codegen_flags: <defaults>
</compile_context>

<pallas_src>
import functools

import jax
import jax.numpy as jnp
from jax.experimental import pallas as pl
from jax.experimental.pallas import tpu as pltpu

LANE = 128   # lane width: feature dims padded to this
TILE = 256   # row/col tile for the A_hat aggregation (multiple of 8 and 128)


def _round_up(n, m):
    return ((n + m - 1) // m) * m


def _pad2(a, rows, cols):
    return jnp.pad(a, ((0, rows - a.shape[0]), (0, cols - a.shape[1])))


# ----------------------------------------------------------------------------
# Kernel 1: per-layer feature transform  XW = X @ W   (row-tiled, bf16 output)
# ----------------------------------------------------------------------------
def xw_kernel(x_ref, w_ref, o_ref):
    o_ref[...] = jnp.dot(x_ref[...], w_ref[...],
                         preferred_element_type=jnp.float32).astype(o_ref.dtype)


def xw_matmul(x, w, tm=TILE):
    n, f = x.shape
    h = w.shape[1]
    return pl.pallas_call(
        xw_kernel,
        grid=(n // tm,),
        in_specs=[pl.BlockSpec((tm, f), lambda i: (i, 0)),
                  pl.BlockSpec((f, h), lambda i: (0, 0))],
        out_specs=pl.BlockSpec((tm, h), lambda i: (i, 0)),
        out_shape=jax.ShapeDtypeStruct((n, h), jnp.bfloat16),
        compiler_params=pltpu.CompilerParams(dimension_semantics=("parallel",)),
    )(x, w)


# ----------------------------------------------------------------------------
# Kernel 2: tiled aggregation + fused affine + ReLU
#   out = relu( (A_hat @ XW) * scale + shift ),  grid = (rows, k-reduction)
# ----------------------------------------------------------------------------
def gcn_agg_kernel(a_ref, xw_ref, scale_ref, shift_ref, o_ref, acc_ref):
    @pl.when(pl.program_id(1) == 0)
    def _():
        acc_ref[...] = jnp.zeros_like(acc_ref)

    acc_ref[...] += jnp.dot(a_ref[...], xw_ref[...],
                            preferred_element_type=jnp.float32)

    @pl.when(pl.program_id(1) == pl.num_programs(1) - 1)
    def _():
        h = acc_ref[...] * scale_ref[...] + shift_ref[...]
        o_ref[...] = jnp.maximum(h, 0.0).astype(o_ref.dtype)


def gcn_aggregate(a_hat, xw, scale, shift, tm=TILE, tk=TILE):
    n = a_hat.shape[0]
    h = xw.shape[1]
    return pl.pallas_call(
        gcn_agg_kernel,
        grid_spec=pltpu.PrefetchScalarGridSpec(
            num_scalar_prefetch=0,
            grid=(n // tm, n // tk),                      # reduction axis last
            in_specs=[pl.BlockSpec((tm, tk), lambda i, k: (i, k)),
                      pl.BlockSpec((tk, h), lambda i, k: (k, 0)),
                      pl.BlockSpec((1, h), lambda i, k: (0, 0)),
                      pl.BlockSpec((1, h), lambda i, k: (0, 0))],
            out_specs=pl.BlockSpec((tm, h), lambda i, k: (i, 0)),
            scratch_shapes=[pltpu.VMEM((tm, h), jnp.float32)]),
        out_shape=jax.ShapeDtypeStruct((n, h), jnp.float32),
        compiler_params=pltpu.CompilerParams(
            dimension_semantics=("parallel", "arbitrary"),
            vmem_limit_bytes=32 * 1024 * 1024),
    )(a_hat, xw, scale, shift)


# ----------------------------------------------------------------------------
# Kernel 3: cluster aggregation + double concat + fc1   (is_val=False branch)
#   num = cluster_id^T @ xs                       (Kp, Hp)
#   x1  = (onehot / counts) @ num                 (M, Hp)   (reciprocal folded in glue)
#   out = cat(cat(xs,x1,1), cat(x1,xs,1), 0) @ W_fc^T + b   lane-dense (P padded to 128)
# ----------------------------------------------------------------------------
def cluster_fc_kernel(xs_ref, cid_ref, ohs_ref, w1_ref, w2_ref, b_ref, o_ref):
    xs = xs_ref[...]                                             # (M, Hp)
    contract_m = (((0,), (0,)), ((), ()))                        # contract node dim
    num = jax.lax.dot_general(cid_ref[...], xs, contract_m,
                              preferred_element_type=jnp.float32)  # (Kp, Hp)
    x1 = jnp.dot(ohs_ref[...], num, preferred_element_type=jnp.float32)  # (M, Hp)

    w1 = w1_ref[...]                                             # (Hp, Pp)
    w2 = w2_ref[...]                                             # (Hp, Pp)
    b = b_ref[...]                                               # (1, Pp)
    top = (jnp.dot(xs, w1, preferred_element_type=jnp.float32)
           + jnp.dot(x1, w2, preferred_element_type=jnp.float32) + b)
    bot = (jnp.dot(x1, w1, preferred_element_type=jnp.float32)
           + jnp.dot(xs, w2, preferred_element_type=jnp.float32) + b)

    m = xs.shape[0]
    # Pp = 128 -> both stores are full-lane (unmasked) vst.
    o_ref[pl.ds(0, m), :] = top.astype(o_ref.dtype)
    o_ref[pl.ds(m, m), :] = bot.astype(o_ref.dtype)


def cluster_fc(xs, cid_p, ohs_p, w1_p, w2_p, b_p):
    m = xs.shape[0]
    p = w1_p.shape[1]
    full = lambda arr: pl.BlockSpec(arr.shape, lambda i: (0,) * arr.ndim)
    return pl.pallas_call(
        cluster_fc_kernel,
        grid=(1,),
        in_specs=[full(xs), full(cid_p), full(ohs_p), full(w1_p), full(w2_p), full(b_p)],
        out_specs=pl.BlockSpec((2 * m, p), lambda i: (0, 0)),
        out_shape=jax.ShapeDtypeStruct((2 * m, p), jnp.float32),
        compiler_params=pltpu.CompilerParams(dimension_semantics=("arbitrary",)),
    )(xs, cid_p, ohs_p, w1_p, w2_p, b_p)


# ----------------------------------------------------------------------------
# Full forward (padding / gather glue in plain JAX, hot path in the kernels)
# ----------------------------------------------------------------------------
@functools.partial(jax.jit, static_argnames=())
def gcn_forward(x, a_hat, layer_params, fc_w, fc_b, cluster_id, cluster_index):
    n, _ = x.shape
    h_dim = layer_params[0][0].shape[1]
    k_dim = cluster_id.shape[1]
    p_dim = fc_w.shape[0]
    m = cluster_index.shape[0]

    n_pad = max(TILE, _round_up(n, TILE))
    h_pad = _round_up(h_dim, LANE)
    k_pad = _round_up(k_dim, LANE)
    p_pad = _round_up(p_dim, LANE)

    a_p = _pad2(a_hat, n_pad, n_pad).astype(jnp.bfloat16)   # bf16 A_hat in HBM
    h = _pad2(x, n_pad, _round_up(x.shape[1], LANE))

    for (w, b, bn_scale, bn_shift) in layer_params:
        f_cur = _round_up(w.shape[0], LANE)
        w_p = _pad2(w, f_cur, h_pad)
        scale_p = _pad2(bn_scale, 1, h_pad)
        shift_p = _pad2(b * bn_scale + bn_shift, 1, h_pad)   # fold GCNConv bias into BN affine
        xw = xw_matmul(h, w_p)                               # (n_pad, h_pad) bf16
        h = gcn_aggregate(a_p, xw, scale_p, shift_p)         # (n_pad, h_pad) f32
        # dropout: eval-mode identity

    xs = jnp.take(h, cluster_index, axis=0)                  # (M, h_pad)

    counts = jnp.sum(cluster_id, axis=0)                     # (K,)   precondition: non-empty clusters
    onehot = jax.nn.one_hot(jnp.argmax(cluster_id, axis=1),
                            k_dim, dtype=jnp.float32)
    onehot_scaled = onehot / counts[None, :]                 # fold 1/count into the gather matrix

    cid_p = _pad2(cluster_id, m, k_pad)
    ohs_p = _pad2(onehot_scaled, m, k_pad)

    w_t = fc_w.T                                             # (2H, P)
    w1_p = _pad2(w_t[:h_dim], h_pad, p_pad)
    w2_p = _pad2(w_t[h_dim:], h_pad, p_pad)
    b_p = _pad2(fc_b.reshape(1, p_dim), 1, p_pad)

    out = cluster_fc(xs, cid_p, ohs_p, w1_p, w2_p, b_p)      # (2M, p_pad)
    return out[:, :p_dim]


def gcn_forward_reference(x, a_hat, layer_params, fc_w, fc_b, cluster_id,
                          cluster_index, match_bf16=False):
    for (w, b, bn_scale, bn_shift) in layer_params:
        xw = x @ w
        a = a_hat
        if match_bf16:
            xw = xw.astype(jnp.bfloat16)
            a = a.astype(jnp.bfloat16)
        h = jnp.dot(a, xw, preferred_element_type=jnp.float32)
        x = jnp.maximum((h + b) * bn_scale + bn_shift, 0.0)
    xs = x[cluster_index]
    cf = (cluster_id.T @ xs) / jnp.sum(cluster_id, axis=0)[:, None]
    x1 = cf[jnp.argmax(cluster_id, axis=1)]
    xc = jnp.concatenate(
        [jnp.concatenate([xs, x1], 1), jnp.concatenate([x1, xs], 1)], 0)
    return xc @ fc_w.T + fc_b


if __name__ == "__main__":
    key = jax.random.PRNGKey(0)

    # Small synthetic sizes consistent with the module (N chosen so tiling kicks in)
    N = 512             # number of graph nodes
    IN_CH = 16          # in_channels
    HID = 32            # hidden_channels
    OUT_CH = 4          # out_channels -> fc1 output = OUT_CH * OUT_CH = 16
    NUM_LAYERS = 2
    M = 64              # len(cluster_index)
    K = 8               # number of clusters

    keys = jax.random.split(key, 10)

    # Node features
    x = jax.random.normal(keys[0], (N, IN_CH), dtype=jnp.float32)

    # Random symmetric adjacency with self loops -> A_hat = D^-1/2 (A + I) D^-1/2
    a_rand = (jax.random.uniform(keys[1], (N, N)) < 0.05).astype(jnp.float32)
    a = jnp.maximum(a_rand, a_rand.T)
    a = jnp.maximum(a, jnp.eye(N, dtype=jnp.float32))
    deg = jnp.sum(a, axis=1)
    d_inv_sqrt = 1.0 / jnp.sqrt(deg)
    a_hat = a * d_inv_sqrt[:, None] * d_inv_sqrt[None, :]

    # Deterministic parameter init (BatchNorm1d eval-mode with fresh running stats)
    eps = 1e-5
    bn_scale = jnp.full((1, HID), 1.0 / jnp.sqrt(1.0 + eps), dtype=jnp.float32)  # gamma=1, var=1
    bn_shift = jnp.zeros((1, HID), dtype=jnp.float32)                            # beta=0, mean=0

    layer_params = []
    fan_ins = [IN_CH] + [HID] * (NUM_LAYERS - 1)
    for li, fin in enumerate(fan_ins):
        bound = (6.0 / (fin + HID)) ** 0.5      # glorot-uniform (GCNConv default)
        w = jax.random.uniform(keys[2 + li], (fin, HID), minval=-bound, maxval=bound,
                               dtype=jnp.float32)
        b = jnp.zeros((1, HID), dtype=jnp.float32)   # GCNConv bias init = zeros
        layer_params.append((w, b, bn_scale, bn_shift))

    P = OUT_CH * OUT_CH
    fc_bound = 1.0 / (2 * HID) ** 0.5
    fc_w = jax.random.uniform(keys[6], (P, 2 * HID), minval=-fc_bound, maxval=fc_bound,
                              dtype=jnp.float32)
    fc_b = jax.random.uniform(keys[7], (P,), minval=-fc_bound, maxval=fc_bound,
                              dtype=jnp.float32)

    # cluster_index: M distinct node ids; cluster_id: one-hot (M, K), every cluster non-empty
    cluster_index = jax.random.permutation(keys[8], N)[:M]
    assign = jax.random.permutation(keys[9], jnp.arange(M) % K)
    cluster_id = jax.nn.one_hot(assign, K, dtype=jnp.float32)

    out = gcn_forward(x, a_hat, layer_params, fc_w, fc_b, cluster_id, cluster_index)
    out = jax.block_until_ready(out)
    assert out.shape == (2 * M, P), out.shape

    # (1) matched reference: same bf16 MXU operands -> tight tolerance
    ref_m = gcn_forward_reference(x, a_hat, layer_params, fc_w, fc_b,
                                  cluster_id, cluster_index, match_bf16=True)
    assert jnp.allclose(out, ref_m, atol=2e-3, rtol=2e-3), \
        float(jnp.max(jnp.abs(out - ref_m)))

    # (2) pure f32 reference: end-to-end semantics, loose tolerance for bf16 MXU inputs
    ref_f = gcn_forward_reference(x, a_hat, layer_params, fc_w, fc_b,
                                  cluster_id, cluster_index, match_bf16=False)
    assert jnp.allclose(out, ref_f, atol=5e-2, rtol=5e-2), \
        float(jnp.max(jnp.abs(out - ref_f)))

    print("KERNEL_OK")
</pallas_src>

<mosaic_0001>
module attributes {stable_mosaic.version = 11 : i64} {
  func.func @xw_kernel(%arg0: i32, %arg1: memref<256x128xf32, #tpu.memory_space<vmem>>, %arg2: memref<128x128xf32, #tpu.memory_space<vmem>>, %arg3: memref<256x128xbf16, #tpu.memory_space<vmem>>) attributes {dimension_semantics = [#tpu.dimension_semantics<parallel>], iteration_bounds = array<i64: 2>, scalar_prefetch = 0 : i64, scratch_operands = 0 : i64, tpu.core_type = #tpu.core_type<tc>, window_params = [{transform_indices = @transform_0, window_bounds = array<i64: 256, 128>}, {pipeline_mode = #tpu.pipeline_mode<synchronous>, transform_indices = @transform_1, window_bounds = array<i64: 128, 128>}, {transform_indices = @transform_2, window_bounds = array<i64: 256, 128>}]} {
    %c0 = arith.constant 0 : index
    %c0_0 = arith.constant 0 : index
    %0 = vector.load %arg1[%c0, %c0_0] : memref<256x128xf32, #tpu.memory_space<vmem>>, vector<256x128xf32>
    %c0_1 = arith.constant 0 : index
    %c0_2 = arith.constant 0 : index
    %1 = vector.load %arg2[%c0_1, %c0_2] : memref<128x128xf32, #tpu.memory_space<vmem>>, vector<128x128xf32>
    %cst = arith.constant dense<0.000000e+00> : vector<256x128xf32>
    %2 = tpu.matmul %0, %1, %cst {dimension_numbers = #tpu.dot_dimension_numbers<[1], [0], [0], [1], [0, 0, 1, 1], [], []>} : vector<256x128xf32>, vector<128x128xf32>, vector<256x128xf32> -> vector<256x128xf32>
    %3 = arith.truncf %2 : vector<256x128xf32> to vector<256x128xbf16>
    %c0_3 = arith.constant 0 : index
    %c0_4 = arith.constant 0 : index
    %4 = vector.load %arg3[%c0_3, %c0_4] : memref<256x128xbf16, #tpu.memory_space<vmem>>, vector<256x128xbf16>
    tpu.vector_store %arg3[%c0_3, %c0_4], %3 {strides = array<i32>} : memref<256x128xbf16, #tpu.memory_space<vmem>>, vector<256x128xbf16>,
    return
  }
  func.func @transform_0(%arg0: i32) -> (i32, i32) {
    %c0_i32 = arith.constant 0 : i32
    %c0_i32_0 = arith.constant 0 : i32
    return %arg0, %c0_i32 : i32, i32
  }
  func.func @transform_1(%arg0: i32) -> (i32, i32) {
    %c0_i32 = arith.constant 0 : i32
    %c0_i32_0 = arith.constant 0 : i32
    %c0_i32_1 = arith.constant 0 : i32
    return %c0_i32, %c0_i32_0 : i32, i32
  }
  func.func @transform_2(%arg0: i32) -> (i32, i32) {
    %c0_i32 = arith.constant 0 : i32
    %c0_i32_0 = arith.constant 0 : i32
    return %arg0, %c0_i32 : i32, i32
  }
}

module attributes {stable_mosaic.version = 11 : i64} {
  func.func @gcn_agg_kernel(%arg0: i32, %arg1: i32, %arg2: memref<256x256xbf16, #tpu.memory_space<vmem>>, %arg3: memref<256x128xbf16, #tpu.memory_space<vmem>>, %arg4: memref<1x128xf32, #tpu.memory_space<vmem>>, %arg5: memref<1x128xf32, #tpu.memory_space<vmem>>, %arg6: memref<256x128xf32, #tpu.memory_space<vmem>>, %arg7: memref<256x128xf32, #tpu.memory_space<vmem>>) attributes {dimension_semantics = [#tpu.dimension_semantics<parallel>, #tpu.dimension_semantics<arbitrary>], iteration_bounds = array<i64: 2, 2>, scalar_prefetch = 0 : i64, scratch_operands = 1 : i64, tpu.core_type = #tpu.core_type<tc>, window_params = [{transform_indices = @transform_0, window_bounds = array<i64: 256, 256>}, {transform_indices = @transform_1, window_bounds = array<i64: 256, 128>}, {pipeline_mode = #tpu.pipeline_mode<synchronous>, transform_indices = @transform_2, window_bounds = array<i64: 1, 128>}, {pipeline_mode = #tpu.pipeline_mode<synchronous>, transform_indices = @transform_3, window_bounds = array<i64: 1, 128>}, {transform_indices = @transform_4, window_bounds = array<i64: 256, 128>}]} {
    %c0_i32 = arith.constant 0 : i32
    %0 = arith.cmpi eq, %arg1, %c0_i32 : i32
    %1 = arith.extui %0 : i1 to i32
    %c0_i32_0 = arith.constant 0 : i32
    %2 = arith.cmpi ne, %1, %c0_i32_0 : i32
    scf.if %2 {
      %cst_9 = arith.constant 0.000000e+00 : f32
      %12 = vector.broadcast %cst_9 : f32 to vector<256x128xf32>
      %c0_10 = arith.constant 0 : index
      %c0_11 = arith.constant 0 : index
      %13 = vector.load %arg7[%c0_10, %c0_11] : memref<256x128xf32, #tpu.memory_space<vmem>>, vector<256x128xf32>
      tpu.vector_store %arg7[%c0_10, %c0_11], %12 {strides = array<i32>} : memref<256x128xf32, #tpu.memory_space<vmem>>, vector<256x128xf32>,
    } else {
    }
    %c0 = arith.constant 0 : index
    %c0_1 = arith.constant 0 : index
    %3 = vector.load %arg7[%c0, %c0_1] : memref<256x128xf32, #tpu.memory_space<vmem>>, vector<256x128xf32>
    %c0_2 = arith.constant 0 : index
    %c0_3 = arith.constant 0 : index
    %4 = vector.load %arg2[%c0_2, %c0_3] : memref<256x256xbf16, #tpu.memory_space<vmem>>, vector<256x256xbf16>
    %c0_4 = arith.constant 0 : index
    %c0_5 = arith.constant 0 : index
    %5 = vector.load %arg3[%c0_4, %c0_5] : memref<256x128xbf16, #tpu.memory_space<vmem>>, vector<256x128xbf16>
    %cst = arith.constant dense<0.000000e+00> : vector<256x128xf32>
    %6 = tpu.matmul %4, %5, %cst {dimension_numbers = #tpu.dot_dimension_numbers<[1], [0], [0], [1], [0, 0, 1, 1], [], []>} : vector<256x256xbf16>, vector<256x128xbf16>, vector<256x128xf32> -> vector<256x128xf32>
    %7 = arith.addf %3, %6 : vector<256x128xf32>
    %c0_6 = arith.constant 0 : index
    %c0_7 = arith.constant 0 : index
    %8 = vector.load %arg7[%c0_6, %c0_7] : memref<256x128xf32, #tpu.memory_space<vmem>>, vector<256x128xf32>
    tpu.vector_store %arg7[%c0_6, %c0_7], %7 {strides = array<i32>} : memref<256x128xf32, #tpu.memory_space<vmem>>, vector<256x128xf32>,
    %c1_i32 = arith.constant 1 : i32
    %9 = arith.cmpi eq, %arg1, %c1_i32 : i32
    %10 = arith.extui %9 : i1 to i32
    %c0_i32_8 = arith.constant 0 : i32
    %11 = arith.cmpi ne, %10, %c0_i32_8 : i32
    scf.if %11 {
      %c0_9 = arith.constant 0 : index
      %c0_10 = arith.constant 0 : index
      %12 = vector.load %arg7[%c0_9, %c0_10] : memref<256x128xf32, #tpu.memory_space<vmem>>, vector<256x128xf32>
      %c0_11 = arith.constant 0 : index
      %c0_12 = arith.constant 0 : index
      %13 = vector.load %arg4[%c0_11, %c0_12] : memref<1x128xf32, #tpu.memory_space<vmem>>, vector<1x128xf32>
      %14 = vector.broadcast %13 : vector<1x128xf32> to vector<256x128xf32>
      %15 = arith.mulf %12, %14 : vector<256x128xf32>
      %c0_13 = arith.constant 0 : index
      %c0_14 = arith.constant 0 : index
      %16 = vector.load %arg5[%c0_13, %c0_14] : memref<1x128xf32, #tpu.memory_space<vmem>>, vector<1x128xf32>
      %17 = vector.broadcast %16 : vector<1x128xf32> to vector<256x128xf32>
      %18 = arith.addf %15, %17 : vector<256x128xf32>
      %cst_15 = arith.constant 0.000000e+00 : f32
      %19 = vector.broadcast %cst_15 : f32 to vector<256x128xf32>
      %20 = arith.maximumf %18, %19 : vector<256x128xf32>
      %c0_16 = arith.constant 0 : index
      %c0_17 = arith.constant 0 : index
      %21 = vector.load %arg6[%c0_16, %c0_17] : memref<256x128xf32, #tpu.memory_space<vmem>>, vector<256x128xf32>
      tpu.vector_store %arg6[%c0_16, %c0_17], %20 {strides = array<i32>} : memref<256x128xf32, #tpu.memory_space<vmem>>, vector<256x128xf32>,
    } else {
    }
    return
  }
  func.func @transform_0(%arg0: i32, %arg1: i32) -> (i32, i32) {
    %c0_i32 = arith.constant 0 : i32
    return %arg0, %arg1 : i32, i32
  }
  func.func @transform_1(%arg0: i32, %arg1: i32) -> (i32, i32) {
    %c0_i32 = arith.constant 0 : i32
    %c0_i32_0 = arith.constant 0 : i32
    return %arg1, %c0_i32 : i32, i32
  }
  func.func @transform_2(%arg0: i32, %arg1: i32) -> (i32, i32) {
    %c0_i32 = arith.constant 0 : i32
    %c0_i32_0 = arith.constant 0 : i32
    %c0_i32_1 = arith.constant 0 : i32
    return %c0_i32, %c0_i32_0 : i32, i32
  }
  func.func @transform_3(%arg0: i32, %arg1: i32) -> (i32, i32) {
    %c0_i32 = arith.constant 0 : i32
    %c0_i32_0 = arith.constant 0 : i32
    %c0_i32_1 = arith.constant 0 : i32
    return %c0_i32, %c0_i32_0 : i32, i32
  }
  func.func @transform_4(%arg0: i32, %arg1: i32) -> (i32, i32) {
    %c0_i32 = arith.constant 0 : i32
    %c0_i32_0 = arith.constant 0 : i32
    return %arg0, %c0_i32 : i32, i32
  }
}

module attributes {stable_mosaic.version = 11 : i64} {
  func.func @cluster_fc_kernel(%arg0: i32, %arg1: memref<64x128xf32, #tpu.memory_space<vmem>>, %arg2: memref<64x128xf32, #tpu.memory_space<vmem>>, %arg3: memref<64x128xf32, #tpu.memory_space<vmem>>, %arg4: memref<128x128xf32, #tpu.memory_space<vmem>>, %arg5: memref<128x128xf32, #tpu.memory_space<vmem>>, %arg6: memref<1x128xf32, #tpu.memory_space<vmem>>, %arg7: memref<128x128xf32, #tpu.memory_space<vmem>>) attributes {dimension_semantics = [#tpu.dimension_semantics<arbitrary>], iteration_bounds = array<i64: 1>, scalar_prefetch = 0 : i64, scratch_operands = 0 : i64, tpu.core_type = #tpu.core_type<tc>, window_params = [{pipeline_mode = #tpu.pipeline_mode<synchronous>, transform_indices = @transform_0, window_bounds = array<i64: 64, 128>}, {pipeline_mode = #tpu.pipeline_mode<synchronous>, transform_indices = @transform_1, window_bounds = array<i64: 64, 128>}, {pipeline_mode = #tpu.pipeline_mode<synchronous>, transform_indices = @transform_2, window_bounds = array<i64: 64, 128>}, {pipeline_mode = #tpu.pipeline_mode<synchronous>, transform_indices = @transform_3, window_bounds = array<i64: 128, 128>}, {pipeline_mode = #tpu.pipeline_mode<synchronous>, transform_indices = @transform_4, window_bounds = array<i64: 128, 128>}, {pipeline_mode = #tpu.pipeline_mode<synchronous>, transform_indices = @transform_5, window_bounds = array<i64: 1, 128>}, {pipeline_mode = #tpu.pipeline_mode<synchronous>, transform_indices = @transform_6, window_bounds = array<i64: 128, 128>}]} {
    %c0 = arith.constant 0 : index
    %c0_0 = arith.constant 0 : index
    %0 = vector.load %arg1[%c0, %c0_0] : memref<64x128xf32, #tpu.memory_space<vmem>>, vector<64x128xf32>
    %c0_1 = arith.constant 0 : index
    %c0_2 = arith.constant 0 : index
    %1 = vector.load %arg2[%c0_1, %c0_2] : memref<64x128xf32, #tpu.memory_space<vmem>>, vector<64x128xf32>
    %cst = arith.constant dense<0.000000e+00> : vector<128x128xf32>
    %2 = tpu.matmul %1, %0, %cst {dimension_numbers = #tpu.dot_dimension_numbers<[0], [0], [1], [1], [0, 1, 1, 1], [], []>} : vector<64x128xf32>, vector<64x128xf32>, vector<128x128xf32> -> vector<128x128xf32>
    %c0_3 = arith.constant 0 : index
    %c0_4 = arith.constant 0 : index
    %3 = vector.load %arg3[%c0_3, %c0_4] : memref<64x128xf32, #tpu.memory_space<vmem>>, vector<64x128xf32>
    %cst_5 = arith.constant dense<0.000000e+00> : vector<64x128xf32>
    %4 = tpu.matmul %3, %2, %cst_5 {dimension_numbers = #tpu.dot_dimension_numbers<[1], [0], [0], [1], [0, 0, 1, 1], [], []>} : vector<64x128xf32>, vector<128x128xf32>, vector<64x128xf32> -> vector<64x128xf32>
    %c0_6 = arith.constant 0 : index
    %c0_7 = arith.constant 0 : index
    %5 = vector.load %arg4[%c0_6, %c0_7] : memref<128x128xf32, #tpu.memory_space<vmem>>, vector<128x128xf32>
    %c0_8 = arith.constant 0 : index
    %c0_9 = arith.constant 0 : index
    %6 = vector.load %arg5[%c0_8, %c0_9] : memref<128x128xf32, #tpu.memory_space<vmem>>, vector<128x128xf32>
    %c0_10 = arith.constant 0 : index
    %c0_11 = arith.constant 0 : index
    %7 = vector.load %arg6[%c0_10, %c0_11] : memref<1x128xf32, #tpu.memory_space<vmem>>, vector<1x128xf32>
    %cst_12 = arith.constant dense<0.000000e+00> : vector<64x128xf32>
    %8 = tpu.matmul %0, %5, %cst_12 {dimension_numbers = #tpu.dot_dimension_numbers<[1], [0], [0], [1], [0, 0, 1, 1], [], []>} : vector<64x128xf32>, vector<128x128xf32>, vector<64x128xf32> -> vector<64x128xf32>
    %cst_13 = arith.constant dense<0.000000e+00> : vector<64x128xf32>
    %9 = tpu.matmul %4, %6, %cst_13 {dimension_numbers = #tpu.dot_dimension_numbers<[1], [0], [0], [1], [0, 0, 1, 1], [], []>} : vector<64x128xf32>, vector<128x128xf32>, vector<64x128xf32> -> vector<64x128xf32>
    %10 = arith.addf %8, %9 : vector<64x128xf32>
    %11 = vector.broadcast %7 : vector<1x128xf32> to vector<64x128xf32>
    %12 = arith.addf %10, %11 : vector<64x128xf32>
    %cst_14 = arith.constant dense<0.000000e+00> : vector<64x128xf32>
    %13 = tpu.matmul %4, %5, %cst_14 {dimension_numbers = #tpu.dot_dimension_numbers<[1], [0], [0], [1], [0, 0, 1, 1], [], []>} : vector<64x128xf32>, vector<128x128xf32>, vector<64x128xf32> -> vector<64x128xf32>
    %cst_15 = arith.constant dense<0.000000e+00> : vector<64x128xf32>
    %14 = tpu.matmul %0, %6, %cst_15 {dimension_numbers = #tpu.dot_dimension_numbers<[1], [0], [0], [1], [0, 0, 1, 1], [], []>} : vector<64x128xf32>, vector<128x128xf32>, vector<64x128xf32> -> vector<64x128xf32>
    %15 = arith.addf %13, %14 : vector<64x128xf32>
    %16 = vector.broadcast %7 : vector<1x128xf32> to vector<64x128xf32>
    %17 = arith.addf %15, %16 : vector<64x128xf32>
    %c0_16 = arith.constant 0 : index
    %c0_17 = arith.constant 0 : index
    %18 = vector.load %arg7[%c0_16, %c0_17] : memref<128x128xf32, #tpu.memory_space<vmem>>, vector<64x128xf32>
    tpu.vector_store %arg7[%c0_16, %c0_17], %12 {strides = array<i32>} : memref<128x128xf32, #tpu.memory_space<vmem>>, vector<64x128xf32>,
    %c64 = arith.constant 64 : index
    %c0_18 = arith.constant 0 : index
    %19 = vector.load %arg7[%c64, %c0_18] : memref<128x128xf32, #tpu.memory_space<vmem>>, vector<64x128xf32>
    tpu.vector_store %arg7[%c64, %c0_18], %17 {strides = array<i32>} : memref<128x128xf32, #tpu.memory_space<vmem>>, vector<64x128xf32>,
    return
  }
  func.func @transform_0(%arg0: i32) -> (i32, i32) {
    %c0_i32 = arith.constant 0 : i32
    %c0_i32_0 = arith.constant 0 : i32
    %c0_i32_1 = arith.constant 0 : i32
    return %c0_i32, %c0_i32_0 : i32, i32
  }
  func.func @transform_1(%arg0: i32) -> (i32, i32) {
    %c0_i32 = arith.constant 0 : i32
    %c0_i32_0 = arith.constant 0 : i32
    %c0_i32_1 = arith.constant 0 : i32
    return %c0_i32, %c0_i32_0 : i32, i32
  }
  func.func @transform_2(%arg0: i32) -> (i32, i32) {
    %c0_i32 = arith.constant 0 : i32
    %c0_i32_0 = arith.constant 0 : i32
    %c0_i32_1 = arith.constant 0 : i32
    return %c0_i32, %c0_i32_0 : i32, i32
  }
  func.func @transform_3(%arg0: i32) -> (i32, i32) {
    %c0_i32 = arith.constant 0 : i32
    %c0_i32_0 = arith.constant 0 : i32
    %c0_i32_1 = arith.constant 0 : i32
    return %c0_i32, %c0_i32_0 : i32, i32
  }
  func.func @transform_4(%arg0: i32) -> (i32, i32) {
    %c0_i32 = arith.constant 0 : i32
    %c0_i32_0 = arith.constant 0 : i32
    %c0_i32_1 = arith.constant 0 : i32
    return %c0_i32, %c0_i32_0 : i32, i32
  }
  func.func @transform_5(%arg0: i32) -> (i32, i32) {
    %c0_i32 = arith.constant 0 : i32
    %c0_i32_0 = arith.constant 0 : i32
    %c0_i32_1 = arith.constant 0 : i32
    return %c0_i32, %c0_i32_0 : i32, i32
  }
  func.func @transform_6(%arg0: i32) -> (i32, i32) {
    %c0_i32 = arith.constant 0 : i32
    %c0_i32_0 = arith.constant 0 : i32
    %c0_i32_1 = arith.constant 0 : i32
    return %c0_i32, %c0_i32_0 : i32, i32
  }
}

</mosaic_0001>

<llo_original>
// kernel: gcn_forward.5
$region0: #{gcn_forward.5}
  #allocation0 [shape = 'u32[]', space=smem, size = 0x4, offset = 0x4, fixed_abs, tag = 'smem constant byte address 0x4 - core index']
  #allocation1 [shape = 'u32[72,128]{1,0:T(1,128)}', space=vmem, size = 0x9000, scoped, tag = 'internal scratch']
  %s0 = inlined_call_operand.vmem [shape: f32[512,128], index: 0, kind: input, shape index: {}]
  %s1 = inlined_call_operand.vmem [shape: f32[128,128], index: 1, kind: input, shape index: {}]
  %s2 = inlined_call_operand.vmem [shape: bf16[512,128], index: 2, kind: output, shape index: {}]
  %s3 = sld [smem:[#allocation0]]
  $region41: #{gcn_forward.5} parent=0
    _
  %s5 = ssub.s32 1, %s3
  %s6 = scalar_select 0, %s5, %s3
  loop: start=0, step=1, limit=4
  $region2: #{gcn_forward.5} parent=0 // loop_pre_header
    _
  $region3: #{gcn_forward.5} parent=0 // loop_header
    %s8 = sphi 0, %s12
    %p9 = scmp.ge.s32.totalorder %s8, 4
    %s18 = sphi 0, %s20
    %s21 = sphi 0, %s18
    %s22 = sphi 0, %s21
    %s38 = sphi 0, %s22
    %s42 = sphi 0, %s42
    %s44 = sphi 0, %s42
    %s45 = sphi 0, %s44
    %s59 = sphi 0, %s45
    %s65 = sphi 0, %s67
    %s68 = sphi 0, %s65
    %s69 = sphi 0, %s68
    %s85 = sphi 0, %s69
  $region4: #{gcn_forward.5} parent=0 // loop_header_branch
    %11 = sbr.rel (%p9) target = $region8
  $region5: #{gcn_forward.5} parent=0 // loop_body
    %s13 = ssub.s32 %s8, 1
    %s14 = ssub.s32 %s8, 2
    %s15 = sadd.s32 %s8, 1
    %s16 = ssub.s32 %s8, %s15
    %p17 = scmp.eq.s32.totalorder %s16, 0
    %s19 = sadd.s32 %s18, 1
    %s20 = scalar_select %p17, %s18, %s19
    %p23 = pneg %p17
    %p24 = scmp.eq.s32.totalorder %s8, 1
    %p25 = por %p23, %p24
    %p26 = scmp.ne.s32.totalorder %s18, %s21
    %p27 = scmp.eq.s32.totalorder %s8, 0
    %p28 = por %p26, %p27
    %p29 = scmp.ne.s32.totalorder %s18, %s21
    %p30 = scmp.eq.s32.totalorder %s13, 1
    %p31 = por %p29, %p30
    %p32 = scmp.ne.s32.totalorder %s21, %s22
    %p33 = scmp.eq.s32.totalorder %s13, 0
    %p34 = por %p32, %p33
    %p35 = scmp.ne.s32.totalorder %s21, %s22
    %p36 = scmp.eq.s32.totalorder %s14, 1
    %p37 = por %p35, %p36
    %p39 = scmp.ne.s32.totalorder %s22, %s38
    %p40 = scmp.eq.s32.totalorder %s14, 0
    %p41 = por %p39, %p40
    %s43 = sadd.s32 %s42, 1
    %p46 = scmp.eq.s32.totalorder %s8, 1
    %p47 = scmp.ne.s32.totalorder %s42, %s44
    %p48 = scmp.eq.s32.totalorder %s8, 0
    %p49 = por %p47, %p48
    %p50 = scmp.ne.s32.totalorder %s42, %s44
    %p51 = scmp.eq.s32.totalorder %s13, 1
    %p52 = por %p50, %p51
    %p53 = scmp.ne.s32.totalorder %s44, %s45
    %p54 = scmp.eq.s32.totalorder %s13, 0
    %p55 = por %p53, %p54
    %p56 = scmp.ne.s32.totalorder %s44, %s45
    %p57 = scmp.eq.s32.totalorder %s14, 1
    %p58 = por %p56, %p57
    %p60 = scmp.ne.s32.totalorder %s45, %s59
    %p61 = scmp.eq.s32.totalorder %s14, 0
    %p62 = por %p60, %p61
    %s63 = ssub.s32 %s8, %s15
    %p64 = scmp.eq.s32.totalorder %s63, 0
    %s66 = sadd.s32 %s65, 1
    %s67 = scalar_select %p64, %s65, %s66
    %p70 = pneg %p64
    %p71 = scmp.eq.s32.totalorder %s8, 1
    %p72 = por %p70, %p71
    %p73 = scmp.ne.s32.totalorder %s65, %s68
    %p74 = scmp.eq.s32.totalorder %s8, 0
    %p75 = por %p73, %p74
    %p76 = scmp.ne.s32.totalorder %s65, %s68
    %p77 = scmp.eq.s32.totalorder %s13, 1
    %p78 = por %p76, %p77
    %p79 = scmp.ne.s32.totalorder %s68, %s69
    %p80 = scmp.eq.s32.totalorder %s13, 0
    %p81 = por %p79, %p80
    %p82 = scmp.ne.s32.totalorder %s68, %s69
    %p83 = scmp.eq.s32.totalorder %s14, 1
    %p84 = por %p82, %p83
    %p86 = scmp.ne.s32.totalorder %s69, %s85
    %p87 = scmp.eq.s32.totalorder %s14, 0
    %p88 = por %p86, %p87
    %p89 = scmp.le.s32.totalorder 1, %s8
    %p90 = scmp.lt.s32.totalorder %s8, 3
    %p91 = pnand %p89, %p90
    %p92 = pneg %p91
    // Predicated region
    $region9: #{gcn_forward.5} parent=5 // pred_check
      _
    $region10: #{gcn_forward.5} parent=5 // pred_check_branch
      %94 = sbr.rel (%p91) target = $region12
    $region11: #{gcn_forward.5} parent=5 // pred_region
      %s95 = ssub.s32 %s8, 1
      // Predicated region
      $region13: #{gcn_forward.5} parent=11 // pred_check
        %p96 = pneg %p55
      $region14: #{gcn_forward.5} parent=11 // pred_check_branch
        %98 = sbr.rel (%p96) target = $region16
      $region15: #{gcn_forward.5} parent=11 // pred_region
        _
      $region16: #{gcn_forward.5} parent=11 // pred_fallthru
        _
    $region12: #{gcn_forward.5} parent=5 // pred_fallthru
      _
    %p99 = scmp.lt.s32.totalorder %s8, 2
    // Predicated region
    $region17: #{gcn_forward.5} parent=5 // pred_check
      %p100 = pneg %p99
    $region18: #{gcn_forward.5} parent=5 // pred_check_branch
      %102 = sbr.rel (%p100) target = $region20
    $region19: #{gcn_forward.5} parent=5 // pred_region
      // Predicated region
      $region21: #{gcn_forward.5} parent=19 // pred_check
        %p103 = pneg %p28
      $region22: #{gcn_forward.5} parent=19 // pred_check_branch
        %105 = sbr.rel (%p103) target = $region24
      $region23: #{gcn_forward.5} parent=19 // pred_region
        %s106 = smul.u32 32, %s8
        %p107 = scmp.lt.s32.totalorder %s106, 63
        %s108 = scalar_select %p107, %s106, 63
        %s109 = smul.addr %s108, 8
        %s110 = scalar_lea.vmem %s0, %s109
        %s111 = smul.u32 32, %s8
      $region24: #{gcn_forward.5} parent=19 // pred_fallthru
        _
    $region20: #{gcn_forward.5} parent=5 // pred_fallthru
      _
    %p112 = scmp.le.s32.totalorder 1, %s8
    %p113 = scmp.lt.s32.totalorder %s8, 3
    %p114 = pnand %p112, %p113
    %p115 = pneg %p114
    // Predicated region
    $region25: #{gcn_forward.5} parent=5 // pred_check
      _
    $region26: #{gcn_forward.5} parent=5 // pred_check_branch
      %117 = sbr.rel (%p114) target = $region28
    $region27: #{gcn_forward.5} parent=5 // pred_region
      %s118 = ssub.s32 %s8, 1
      %s119 = smul.u32 32, %s13
      %p120 = scmp.lt.s32.totalorder %s119, 63
      %s121 = scalar_select %p120, %s119, 63
      %s122 = smul.addr %s121, 8
      %s123 = scalar_lea.vmem %s0, %s122
      %p124 = pneg %p34
      %p125 = pneg %p31
      %p126 = pneg %p55
      %p127 = pneg %p52
      %p128 = pneg %p81
      %p129 = pneg %p78
      %s130 = smul.u32 32, %s13
      %p131 = scmp.lt.s32.totalorder %s130, 63
      %s132 = scalar_select %p131, %s130, 63
      %s133 = smul.addr %s132, 4
      %s134 = scalar_lea.vmem %s2, %s133
      %s135 = smul.u32 32, %s13
      %p136 = scmp.lt.s32.totalorder %s135, 63
      %s137 = scalar_select %p136, %s135, 63
      %s138 = smul.addr %s137, 8
      %s139 = scalar_lea.vmem %s0, %s138
      %s140 = smul.u32 32, %s13
      %s141 = smul.u32 32, %s13
      %p142 = scmp.lt.s32.totalorder %s141, 63
      %s143 = scalar_select %p142, %s141, 63
      %s144 = smul.addr %s143, 4
      %s145 = scalar_lea.vmem %s2, %s144
      %s146 = smul.u32 32, %s13
      %v147 = vld [vmem:[%s139] sm:$0xff]
      %v148 = vld [vmem:[%s139 + $0x8] sm:$0xff]
      %v149 = vld [vmem:[%s139 + $0x10] sm:$0xff]
      %v150 = vld [vmem:[%s139 + $0x18] sm:$0xff]
      %v151 = vld [vmem:[%s139 + $0x20] sm:$0xff]
      %v152 = vld [vmem:[%s139 + $0x28] sm:$0xff]
      %v153 = vld [vmem:[%s139 + $0x30] sm:$0xff]
      %v154 = vld [vmem:[%s139 + $0x38] sm:$0xff]
      %v155 = vld [vmem:[%s139 + $0x40] sm:$0xff]
      %v156 = vld [vmem:[%s139 + $0x48] sm:$0xff]
      %v157 = vld [vmem:[%s139 + $0x50] sm:$0xff]
      %v158 = vld [vmem:[%s139 + $0x58] sm:$0xff]
      %v159 = vld [vmem:[%s139 + $0x60] sm:$0xff]
      %v160 = vld [vmem:[%s139 + $0x68] sm:$0xff]
      %v161 = vld [vmem:[%s139 + $0x70] sm:$0xff]
      %v162 = vld [vmem:[%s139 + $0x78] sm:$0xff]
      %v163 = vld [vmem:[%s139 + $0x80] sm:$0xff]
      %v164 = vld [vmem:[%s139 + $0x88] sm:$0xff]
      %v165 = vld [vmem:[%s139 + $0x90] sm:$0xff]
      %v166 = vld [vmem:[%s139 + $0x98] sm:$0xff]
      %v167 = vld [vmem:[%s139 + $0xa0] sm:$0xff]
      %v168 = vld [vmem:[%s139 + $0xa8] sm:$0xff]
      %v169 = vld [vmem:[%s139 + $0xb0] sm:$0xff]
      %v170 = vld [vmem:[%s139 + $0xb8] sm:$0xff]
      %v171 = vld [vmem:[%s139 + $0xc0] sm:$0xff]
      %v172 = vld [vmem:[%s139 + $0xc8] sm:$0xff]
      %v173 = vld [vmem:[%s139 + $0xd0] sm:$0xff]
      %v174 = vld [vmem:[%s139 + $0xd8] sm:$0xff]
      %v175 = vld [vmem:[%s139 + $0xe0] sm:$0xff]
      %v176 = vld [vmem:[%s139 + $0xe8] sm:$0xff]
      %v177 = vld [vmem:[%s139 + $0xf0] sm:$0xff]
      %v178 = vld [vmem:[%s139 + $0xf8] sm:$0xff]
      %v179 = vld [vmem:[%s1] sm:$0xff]
      %v180 = vld [vmem:[%s1 + $0x8] sm:$0xff]
      %v181 = vld [vmem:[%s1 + $0x10] sm:$0xff]
      %v182 = vld [vmem:[%s1 + $0x18] sm:$0xff]
      %v183 = vld [vmem:[%s1 + $0x20] sm:$0xff]
      %v184 = vld [vmem:[%s1 + $0x28] sm:$0xff]
      %v185 = vld [vmem:[%s1 + $0x30] sm:$0xff]
      %v186 = vld [vmem:[%s1 + $0x38] sm:$0xff]
      %v187 = vld [vmem:[%s1 + $0x40] sm:$0xff]
      %v188 = vld [vmem:[%s1 + $0x48] sm:$0xff]
      %v189 = vld [vmem:[%s1 + $0x50] sm:$0xff]
      %v190 = vld [vmem:[%s1 + $0x58] sm:$0xff]
      %v191 = vld [vmem:[%s1 + $0x60] sm:$0xff]
      %v192 = vld [vmem:[%s1 + $0x68] sm:$0xff]
      %v193 = vld [vmem:[%s1 + $0x70] sm:$0xff]
      %v194 = vld [vmem:[%s1 + $0x78] sm:$0xff]
      %195 = vmatpush.msra.mxu0 %v194
      %196 = vmatpush.msra.mxu0 %v193
      %197 = vmatpush.msra.mxu0 %v192
      %198 = vmatpush.msra.mxu0 %v191
      %199 = vmatpush.msra.mxu0 %v190
      %200 = vmatpush.msra.mxu0 %v189
      %201 = vmatpush.msra.mxu0 %v188
      %202 = vmatpush.msra.mxu0 %v187
      %203 = vmatpush.msra.mxu0 %v186
      %204 = vmatpush.msra.mxu0 %v185
      %205 = vmatpush.msra.mxu0 %v184
      %206 = vmatpush.msra.mxu0 %v183
      %207 = vmatpush.msra.mxu0 %v182
      %208 = vmatpush.msra.mxu0 %v181
      %209 = vmatpush.msra.mxu0 %v180
      %210 = vmatpush.msra.mxu0 %v179
      %211 = vmatmul.f32.gmra.mxu0 %v147
      %v212 = vpop.f32.mrf.mxu0
      %v213 = vadd.f32 0.0, %v212
      %214 = vmatmul.f32.gmra.mxu0 %v148
      %v215 = vpop.f32.mrf.mxu0
      %v216 = vadd.f32 0.0, %v215
      %217 = vmatmul.f32.gmra.mxu0 %v149
      %v218 = vpop.f32.mrf.mxu0
      %v219 = vadd.f32 0.0, %v218
      %220 = vmatmul.f32.gmra.mxu0 %v150
      %v221 = vpop.f32.mrf.mxu0
      %v222 = vadd.f32 0.0, %v221
      %223 = vmatmul.f32.gmra.mxu0 %v151
      %v224 = vpop.f32.mrf.mxu0
      %v225 = vadd.f32 0.0, %v224
      %226 = vmatmul.f32.gmra.mxu0 %v152
      %v227 = vpop.f32.mrf.mxu0
      %v228 = vadd.f32 0.0, %v227
      %229 = vmatmul.f32.gmra.mxu0 %v153
      %v230 = vpop.f32.mrf.mxu0
      %v231 = vadd.f32 0.0, %v230
      %232 = vmatmul.f32.gmra.mxu0 %v154
      %v233 = vpop.f32.mrf.mxu0
      %v234 = vadd.f32 0.0, %v233
      %235 = vmatmul.f32.gmra.mxu0 %v155
      %v236 = vpop.f32.mrf.mxu0
      %v237 = vadd.f32 0.0, %v236
      %238 = vmatmul.f32.gmra.mxu0 %v156
      %v239 = vpop.f32.mrf.mxu0
      %v240 = vadd.f32 0.0, %v239
      %241 = vmatmul.f32.gmra.mxu0 %v157
      %v242 = vpop.f32.mrf.mxu0
      %v243 = vadd.f32 0.0, %v242
      %244 = vmatmul.f32.gmra.mxu0 %v158
      %v245 = vpop.f32.mrf.mxu0
      %v246 = vadd.f32 0.0, %v245
      %247 = vmatmul.f32.gmra.mxu0 %v159
      %v248 = vpop.f32.mrf.mxu0
      %v249 = vadd.f32 0.0, %v248
      %250 = vmatmul.f32.gmra.mxu0 %v160
      %v251 = vpop.f32.mrf.mxu0
      %v252 = vadd.f32 0.0, %v251
      %253 = vmatmul.f32.gmra.mxu0 %v161
      %v254 = vpop.f32.mrf.mxu0
      %v255 = vadd.f32 0.0, %v254
      %256 = vmatmul.f32.gmra.mxu0 %v162
      %v257 = vpop.f32.mrf.mxu0
      %v258 = vadd.f32 0.0, %v257
      %259 = vmatmul.f32.gmra.mxu0 %v163
      %v260 = vpop.f32.mrf.mxu0
      %v261 = vadd.f32 0.0, %v260
      %262 = vmatmul.f32.gmra.mxu0 %v164
      %v263 = vpop.f32.mrf.mxu0
      %v264 = vadd.f32 0.0, %v263
      %265 = vmatmul.f32.gmra.mxu0 %v165
      %v266 = vpop.f32.mrf.mxu0
      %v267 = vadd.f32 0.0, %v266
      %268 = vmatmul.f32.gmra.mxu0 %v166
      %v269 = vpop.f32.mrf.mxu0
      %v270 = vadd.f32 0.0, %v269
      %271 = vmatmul.f32.gmra.mxu0 %v167
      %v272 = vpop.f32.mrf.mxu0
      %v273 = vadd.f32 0.0, %v272
      %274 = vmatmul.f32.gmra.mxu0 %v168
      %v275 = vpop.f32.mrf.mxu0
      %v276 = vadd.f32 0.0, %v275
      %277 = vmatmul.f32.gmra.mxu0 %v169
      %v278 = vpop.f32.mrf.mxu0
      %v279 = vadd.f32 0.0, %v278
      %280 = vmatmul.f32.gmra.mxu0 %v170
      %v281 = vpop.f32.mrf.mxu0
      %v282 = vadd.f32 0.0, %v281
      %283 = vmatmul.f32.gmra.mxu0 %v171
      %v284 = vpop.f32.mrf.mxu0
      %v285 = vadd.f32 0.0, %v284
      %286 = vmatmul.f32.gmra.mxu0 %v172
      %v287 = vpop.f32.mrf.mxu0
      %v288 = vadd.f32 0.0, %v287
      %289 = vmatmul.f32.gmra.mxu0 %v173
      %v290 = vpop.f32.mrf.mxu0
      %v291 = vadd.f32 0.0, %v290
      %292 = vmatmul.f32.gmra.mxu0 %v174
      %v293 = vpop.f32.mrf.mxu0
      %v294 = vadd.f32 0.0, %v293
      %295 = vmatmul.f32.gmra.mxu0 %v175
      %v296 = vpop.f32.mrf.mxu0
      %v297 = vadd.f32 0.0, %v296
      %298 = vmatmul.f32.gmra.mxu0 %v176
      %v299 = vpop.f32.mrf.mxu0
      %v300 = vadd.f32 0.0, %v299
      %301 = vmatmul.f32.gmra.mxu0 %v177
      %v302 = vpop.f32.mrf.mxu0
      %v303 = vadd.f32 0.0, %v302
      %304 = vmatmul.f32.gmra.mxu0 %v178
      %v305 = vpop.f32.mrf.mxu0
      %v306 = vadd.f32 0.0, %v305
      %307 = vdwg.mxu0
      %v308 = vpack.c.bf16 %v213, %v213
      %v309 = vpack.c.bf16 %v216, %v216
      %v310 = vpack.c.bf16 %v219, %v219
      %v311 = vpack.c.bf16 %v222, %v222
      %v312 = vpack.c.bf16 %v225, %v225
      %v313 = vpack.c.bf16 %v228, %v228
      %v314 = vpack.c.bf16 %v231, %v231
      %v315 = vpack.c.bf16 %v234, %v234
      %v316 = vpack.c.bf16 %v237, %v237
      %v317 = vpack.c.bf16 %v240, %v240
      %v318 = vpack.c.bf16 %v243, %v243
      %v319 = vpack.c.bf16 %v246, %v246
      %v320 = vpack.c.bf16 %v249, %v249
      %v321 = vpack.c.bf16 %v252, %v252
      %v322 = vpack.c.bf16 %v255, %v255
      %v323 = vpack.c.bf16 %v258, %v258
      %v324 = vpack.c.bf16 %v261, %v261
      %v325 = vpack.c.bf16 %v264, %v264
      %v326 = vpack.c.bf16 %v267, %v267
      %v327 = vpack.c.bf16 %v270, %v270
      %v328 = vpack.c.bf16 %v273, %v273
      %v329 = vpack.c.bf16 %v276, %v276
      %v330 = vpack.c.bf16 %v279, %v279
      %v331 = vpack.c.bf16 %v282, %v282
      %v332 = vpack.c.bf16 %v285, %v285
      %v333 = vpack.c.bf16 %v288, %v288
      %v334 = vpack.c.bf16 %v291, %v291
      %v335 = vpack.c.bf16 %v294, %v294
      %v336 = vpack.c.bf16 %v297, %v297
      %v337 = vpack.c.bf16 %v300, %v300
      %v338 = vpack.c.bf16 %v303, %v303
      %v339 = vpack.c.bf16 %v306, %v306
      %340 = vst [vmem:[%s145] sm:$0xf] %v308
      %341 = vst [vmem:[%s145 + $0x4] sm:$0xf] %v309
      %342 = vst [vmem:[%s145 + $0x8] sm:$0xf] %v310
      %343 = vst [vmem:[%s145 + $0xc] sm:$0xf] %v311
      %344 = vst [vmem:[%s145 + $0x10] sm:$0xf] %v312
      %345 = vst [vmem:[%s145 + $0x14] sm:$0xf] %v313
      %346 = vst [vmem:[%s145 + $0x18] sm:$0xf] %v314
      %347 = vst [vmem:[%s145 + $0x1c] sm:$0xf] %v315
      %348 = vst [vmem:[%s145 + $0x20] sm:$0xf] %v316
      %349 = vst [vmem:[%s145 + $0x24] sm:$0xf] %v317
      %350 = vst [vmem:[%s145 + $0x28] sm:$0xf] %v318
      %351 = vst [vmem:[%s145 + $0x2c] sm:$0xf] %v319
      %352 = vst [vmem:[%s145 + $0x30] sm:$0xf] %v320
      %353 = vst [vmem:[%s145 + $0x34] sm:$0xf] %v321
      %354 = vst [vmem:[%s145 + $0x38] sm:$0xf] %v322
      %355 = vst [vmem:[%s145 + $0x3c] sm:$0xf] %v323
      %356 = vst [vmem:[%s145 + $0x40] sm:$0xf] %v324
      %357 = vst [vmem:[%s145 + $0x44] sm:$0xf] %v325
      %358 = vst [vmem:[%s145 + $0x48] sm:$0xf] %v326
      %359 = vst [vmem:[%s145 + $0x4c] sm:$0xf] %v327
      %360 = vst [vmem:[%s145 + $0x50] sm:$0xf] %v328
      %361 = vst [vmem:[%s145 + $0x54] sm:$0xf] %v329
      %362 = vst [vmem:[%s145 + $0x58] sm:$0xf] %v330
      %363 = vst [vmem:[%s145 + $0x5c] sm:$0xf] %v331
      %364 = vst [vmem:[%s145 + $0x60] sm:$0xf] %v332
      %365 = vst [vmem:[%s145 + $0x64] sm:$0xf] %v333
      %366 = vst [vmem:[%s145 + $0x68] sm:$0xf] %v334
      %367 = vst [vmem:[%s145 + $0x6c] sm:$0xf] %v335
      %368 = vst [vmem:[%s145 + $0x70] sm:$0xf] %v336
      %369 = vst [vmem:[%s145 + $0x74] sm:$0xf] %v337
      %370 = vst [vmem:[%s145 + $0x78] sm:$0xf] %v338
      %371 = vst [vmem:[%s145 + $0x7c] sm:$0xf] %v339
      %s372 = smul.u32 32, %s13
      %p373 = scmp.lt.s32.totalorder %s372, 63
      %s374 = scalar_select %p373, %s372, 63
      %s375 = smul.addr %s374, 4
      %s376 = scalar_lea.vmem %s2, %s375
      // Predicated region
      $region29: #{gcn_forward.5} parent=27 // pred_check
        %p377 = pneg %p78
      $region30: #{gcn_forward.5} parent=27 // pred_check_branch
        %379 = sbr.rel (%p377) target = $region32
      $region31: #{gcn_forward.5} parent=27 // pred_region
        %s380 = smul.u32 32, %s13
      $region32: #{gcn_forward.5} parent=27 // pred_fallthru
        _
    $region28: #{gcn_forward.5} parent=5 // pred_fallthru
      _
    %p381 = scmp.le.s32.totalorder 2, %s8
    // Predicated region
    $region33: #{gcn_forward.5} parent=5 // pred_check
      %p382 = pneg %p381
    $region34: #{gcn_forward.5} parent=5 // pred_check_branch
      %384 = sbr.rel (%p382) target = $region36
    $region35: #{gcn_forward.5} parent=5 // pred_region
      %s385 = ssub.s32 %s8, 2
      // Predicated region
      $region37: #{gcn_forward.5} parent=35 // pred_check
        %p386 = pneg %p84
      $region38: #{gcn_forward.5} parent=35 // pred_check_branch
        %388 = sbr.rel (%p386) target = $region40
      $region39: #{gcn_forward.5} parent=35 // pred_region
        %s389 = smul.u32 32, %s14
        %p390 = scmp.lt.s32.totalorder %s389, 63
        %s391 = scalar_select %p390, %s389, 63
        %s392 = smul.addr %s391, 4
        %s393 = scalar_lea.vmem %s2, %s392
      $region40: #{gcn_forward.5} parent=35 // pred_fallthru
        _
    $region36: #{gcn_forward.5} parent=5 // pred_fallthru
      _
  $region6: #{gcn_forward.5} parent=0 // loop_footer
    %s12 = sadd.s32 1, %s8
  $region7: #{gcn_forward.5} parent=0 // loop_footer_branch
    %7 = sbr.rel target = $region3
  $region8: #{gcn_forward.5} parent=0 // loop_exit
    _

// kernel: gcn_forward.6
$region0: #{gcn_forward.6}
  #allocation0 [shape = 'u32[]', space=smem, size = 0x4, offset = 0x4, fixed_abs, tag = 'smem constant byte address 0x4 - core index']
  #allocation1 [shape = 'u32[72,128]{1,0:T(1,128)}', space=vmem, size = 0x9000, scoped, tag = 'internal scratch']
  #allocation2 [shape = 'f32[256,128]{1,0:T(8,128)}', space=vmem, size = 0x20000, scoped, tag = 'scratch operand']
  %s0 = inlined_call_operand.vmem [shape: bf16[512,512], index: 0, kind: input, shape index: {}]
  %s1 = inlined_call_operand.vmem [shape: bf16[512,128], index: 1, kind: input, shape index: {}]
  %s2 = inlined_call_operand.vmem [shape: f32[1,128], index: 2, kind: input, shape index: {}]
  %s3 = inlined_call_operand.vmem [shape: f32[1,128], index: 3, kind: input, shape index: {}]
  %s4 = inlined_call_operand.vmem [shape: f32[512,128], index: 4, kind: output, shape index: {}]
  %s5 = sld [smem:[#allocation0]]
  $region95: #{gcn_forward.6} parent=0
    _
  %s7 = ssub.s32 1, %s5
  %s8 = scalar_select 0, %s7, %s5
  $region1: #{gcn_forward.6} parent=0
    #allocation3 [shape = 'u8[262144]{0}', space=vmem, size = 0x40000, scoped, tag = 'input window, operand 0']
    loop: start=0, step=1, limit=6
    $region2: #{gcn_forward.6} parent=1 // loop_pre_header
      _
    $region3: #{gcn_forward.6} parent=1 // loop_header
      %s10 = sphi 0, %s14
      %p11 = scmp.ge.s32.totalorder %s10, 6
      %s17 = sphi 0, %s29
      %s18 = sphi 0, %s25
      %s19 = sphi 0, %s17
      %s20 = sphi 0, %s18
      %s21 = sphi 0, %s19
      %s22 = sphi 0, %s20
      %s34 = sphi 0, %s36
      %s37 = sphi 0, %s34
      %s38 = sphi 0, %s37
      %s54 = sphi 0, %s38
      %s60 = sphi 0, %s62
      %s63 = sphi 0, %s60
      %s64 = sphi 0, %s63
      %s80 = sphi 0, %s64
      %s84 = sphi 0, %s84
      %s86 = sphi 0, %s84
      %s87 = sphi 0, %s86
      %s101 = sphi 0, %s87
      %s105 = sphi 0, %s105
      %s107 = sphi 0, %s105
      %s108 = sphi 0, %s107
      %s122 = sphi 0, %s108
      %s128 = sphi 0, %s130
      %s131 = sphi 0, %s128
      %s132 = sphi 0, %s131
      %s148 = sphi 0, %s132
    $region4: #{gcn_forward.6} parent=1 // loop_header_branch
      %13 = sbr.rel (%p11) target = $region8
    $region5: #{gcn_forward.6} parent=1 // loop_body
      %s15 = ssub.s32 %s10, 1
      %s16 = ssub.s32 %s10, 2
      %s23 = sadd.s32 1, %s18
      %p24 = scmp.ge.s32.totalorder %s23, 2
      %s25 = scalar_select %p24, 0, %s23
      %s26 = sadd.s32 1, %s17
      %s27 = scalar_select %p24, %s26, %s17
      %p28 = scmp.ge.s32.totalorder %s27, 2
      %s29 = scalar_select %p28, 0, %s27
      %s30 = ssub.s32 %s17, %s29
      %s31 = ssub.s32 %s18, %s25
      %s32 = sor.u32 %s30, %s31
      %p33 = scmp.eq.s32.totalorder %s32, 0
      %s35 = sadd.s32 %s34, 1
      %s36 = scalar_select %p33, %s34, %s35
      %p39 = pneg %p33
      %p40 = scmp.eq.s32.totalorder %s10, 3
      %p41 = por %p39, %p40
      %p42 = scmp.ne.s32.totalorder %s34, %s37
      %p43 = scmp.eq.s32.totalorder %s10, 0
      %p44 = por %p42, %p43
      %p45 = scmp.ne.s32.totalorder %s34, %s37
      %p46 = scmp.eq.s32.totalorder %s15, 3
      %p47 = por %p45, %p46
      %p48 = scmp.ne.s32.totalorder %s37, %s38
      %p49 = scmp.eq.s32.totalorder %s15, 0
      %p50 = por %p48, %p49
      %p51 = scmp.ne.s32.totalorder %s37, %s38
      %p52 = scmp.eq.s32.totalorder %s16, 3
      %p53 = por %p51, %p52
      %p55 = scmp.ne.s32.totalorder %s38, %s54
      %p56 = scmp.eq.s32.totalorder %s16, 0
      %p57 = por %p55, %p56
      %s58 = ssub.s32 %s18, %s25
      %p59 = scmp.eq.s32.totalorder %s58, 0
      %s61 = sadd.s32 %s60, 1
      %s62 = scalar_select %p59, %s60, %s61
      %p65 = pneg %p59
      %p66 = scmp.eq.s32.totalorder %s10, 3
      %p67 = por %p65, %p66
      %p68 = scmp.ne.s32.totalorder %s60, %s63
      %p69 = scmp.eq.s32.totalorder %s10, 0
      %p70 = por %p68, %p69
      %p71 = scmp.ne.s32.totalorder %s60, %s63
      %p72 = scmp.eq.s32.totalorder %s15, 3
      %p73 = por %p71, %p72
      %p74 = scmp.ne.s32.totalorder %s63, %s64
      %p75 = scmp.eq.s32.totalorder %s15, 0
      %p76 = por %p74, %p75
      %p77 = scmp.ne.s32.totalorder %s63, %s64
      %p78 = scmp.eq.s32.totalorder %s16, 3
      %p79 = por %p77, %p78
      %p81 = scmp.ne.s32.totalorder %s64, %s80
      %p82 = scmp.eq.s32.totalorder %s16, 0
      %p83 = por %p81, %p82
      %s85 = sadd.s32 %s84, 1
      %p88 = scmp.eq.s32.totalorder %s10, 3
      %p89 = scmp.ne.s32.totalorder %s84, %s86
      %p90 = scmp.eq.s32.totalorder %s10, 0
      %p91 = por %p89, %p90
      %p92 = scmp.ne.s32.totalorder %s84, %s86
      %p93 = scmp.eq.s32.totalorder %s15, 3
      %p94 = por %p92, %p93
      %p95 = scmp.ne.s32.totalorder %s86, %s87
      %p96 = scmp.eq.s32.totalorder %s15, 0
      %p97 = por %p95, %p96
      %p98 = scmp.ne.s32.totalorder %s86, %s87
      %p99 = scmp.eq.s32.totalorder %s16, 3
      %p100 = por %p98, %p99
      %p102 = scmp.ne.s32.totalorder %s87, %s101
      %p103 = scmp.eq.s32.totalorder %s16, 0
      %p104 = por %p102, %p103
      %s106 = sadd.s32 %s105, 1
      %p109 = scmp.eq.s32.totalorder %s10, 3
      %p110 = scmp.ne.s32.totalorder %s105, %s107
      %p111 = scmp.eq.s32.totalorder %s10, 0
      %p112 = por %p110, %p111
      %p113 = scmp.ne.s32.totalorder %s105, %s107
      %p114 = scmp.eq.s32.totalorder %s15, 3
      %p115 = por %p113, %p114
      %p116 = scmp.ne.s32.totalorder %s107, %s108
      %p117 = scmp.eq.s32.totalorder %s15, 0
      %p118 = por %p116, %p117
      %p119 = scmp.ne.s32.totalorder %s107, %s108
      %p120 = scmp.eq.s32.totalorder %s16, 3
      %p121 = por %p119, %p120
      %p123 = scmp.ne.s32.totalorder %s108, %s122
      %p124 = scmp.eq.s32.totalorder %s16, 0
      %p125 = por %p123, %p124
      %s126 = ssub.s32 %s17, %s29
      %p127 = scmp.eq.s32.totalorder %s126, 0
      %s129 = sadd.s32 %s128, 1
      %s130 = scalar_select %p127, %s128, %s129
      %p133 = pneg %p127
      %p134 = scmp.eq.s32.totalorder %s10, 3
      %p135 = por %p133, %p134
      %p136 = scmp.ne.s32.totalorder %s128, %s131
      %p137 = scmp.eq.s32.totalorder %s10, 0
      %p138 = por %p136, %p137
      %p139 = scmp.ne.s32.totalorder %s128, %s131
      %p140 = scmp.eq.s32.totalorder %s15, 3
      %p141 = por %p139, %p140
      %p142 = scmp.ne.s32.totalorder %s131, %s132
      %p143 = scmp.eq.s32.totalorder %s15, 0
      %p144 = por %p142, %p143
      %p145 = scmp.ne.s32.totalorder %s131, %s132
      %p146 = scmp.eq.s32.totalorder %s16, 3
      %p147 = por %p145, %p146
      %p149 = scmp.ne.s32.totalorder %s132, %s148
      %p150 = scmp.eq.s32.totalorder %s16, 0
      %p151 = por %p149, %p150
      %p152 = scmp.le.s32.totalorder 1, %s10
      %p153 = scmp.lt.s32.totalorder %s10, 5
      %p154 = pnand %p152, %p153
      %p155 = pneg %p154
      // Predicated region
      $region9: #{gcn_forward.6} parent=5 // pred_check
        _
      $region10: #{gcn_forward.6} parent=5 // pred_check_branch
        %157 = sbr.rel (%p154) target = $region12
      $region11: #{gcn_forward.6} parent=5 // pred_region
        %s158 = ssub.s32 %s10, 1
        // Predicated region
        $region13: #{gcn_forward.6} parent=11 // pred_check
          %p159 = pneg %p97
        $region14: #{gcn_forward.6} parent=11 // pred_check_branch
          %161 = sbr.rel (%p159) target = $region16
        $region15: #{gcn_forward.6} parent=11 // pred_region
          _
        $region16: #{gcn_forward.6} parent=11 // pred_fallthru
          _
        // Predicated region
        $region17: #{gcn_forward.6} parent=11 // pred_check
          %p162 = pneg %p118
        $region18: #{gcn_forward.6} parent=11 // pred_check_branch
          %164 = sbr.rel (%p162) target = $region20
        $region19: #{gcn_forward.6} parent=11 // pred_region
          _
        $region20: #{gcn_forward.6} parent=11 // pred_fallthru
          _
      $region12: #{gcn_forward.6} parent=5 // pred_fallthru
        _
      %p165 = scmp.lt.s32.totalorder %s10, 4
      // Predicated region
      $region21: #{gcn_forward.6} parent=5 // pred_check
        %p166 = pneg %p165
      $region22: #{gcn_forward.6} parent=5 // pred_check_branch
        %168 = sbr.rel (%p166) target = $region24
      $region23: #{gcn_forward.6} parent=5 // pred_region
        // Predicated region
        $region25: #{gcn_forward.6} parent=23 // pred_check
          %p169 = pneg %p44
        $region26: #{gcn_forward.6} parent=23 // pred_check_branch
          %171 = sbr.rel (%p169) target = $region28
        $region27: #{gcn_forward.6} parent=23 // pred_region
          %s172 = sand.u32 %s34, 1
          %s173 = sand.u32 %s34, 1
          %s174 = smul.addr %s173, 256
          %s175 = scalar_lea.vmem [#allocation3], %s174
          %s176 = smul.u32 32, %s17
          %s177 = smul.u32 2, %s18
          %s178 = smul.addr %s176, 4
          %s179 = sadd.s32 %s177, %s178
          %s180 = smul.addr %s179, 4
          %s181 = scalar_lea.vmem %s0, %s180
          // Predicated region
          $region29: #{gcn_forward.6} parent=27 // pred_check
            _
          $region30: #{gcn_forward.6} parent=27 // pred_check_branch
            %183 = sbr.rel (0) target = $region32
          $region31: #{gcn_forward.6} parent=27 // pred_region
            // Predicated region
            $region33: #{gcn_forward.6} parent=31 // pred_check
              _
            $region34: #{gcn_forward.6} parent=31 // pred_check_branch
              %185 = sbr.rel (0) target = $region36
            $region35: #{gcn_forward.6} parent=31 // pred_region
              // Predicated region
              $region48: #{gcn_forward.6} parent=35 // pred_check
                _
              $region49: #{gcn_forward.6} parent=35 // pred_check_branch
                %263 = sbr.rel (0) target = $region51
              $region50: #{gcn_forward.6} parent=35 // pred_region
                loop: start=0, step=1, limit=1
                $region52: #{gcn_forward.6} parent=50 // loop_pre_header
                  _
                $region53: #{gcn_forward.6} parent=50 // loop_header
                  %s265 = sphi 0, %s269
                  %p266 = scmp.ge.s32.totalorder %s265, 1
                  %s270 = sphi %s181, %s181
                  %s271 = sphi %s175, %s175
                $region54: #{gcn_forward.6} parent=50 // loop_header_branch
                  %268 = sbr.rel (%p266) target = $region58
                $region55: #{gcn_forward.6} parent=50 // loop_body
                  %v272 = vld [vmem:[%s270] sm:$0xff]
                  %273 = vst [vmem:[%s271] sm:$0xff] %v272
                  %v274 = vld [vmem:[%s270 + $0x10] sm:$0xff]
                  %275 = vst [vmem:[%s271 + $0x8] sm:$0xff] %v274
                  %v276 = vld [vmem:[%s270 + $0x20] sm:$0xff]
                  %277 = vst [vmem:[%s271 + $0x10] sm:$0xff] %v276
                  %v278 = vld [vmem:[%s270 + $0x30] sm:$0xff]
                  %279 = vst [vmem:[%s271 + $0x18] sm:$0xff] %v278
                  %v280 = vld [vmem:[%s270 + $0x40] sm:$0xff]
                  %281 = vst [vmem:[%s271 + $0x20] sm:$0xff] %v280
                  %v282 = vld [vmem:[%s270 + $0x50] sm:$0xff]
                  %283 = vst [vmem:[%s271 + $0x28] sm:$0xff] %v282
                  %v284 = vld [vmem:[%s270 + $0x60] sm:$0xff]
                  %285 = vst [vmem:[%s271 + $0x30] sm:$0xff] %v284
                  %v286 = vld [vmem:[%s270 + $0x70] sm:$0xff]
                  %287 = vst [vmem:[%s271 + $0x38] sm:$0xff] %v286
                  %v288 = vld [vmem:[%s270 + $0x80] sm:$0xff]
                  %289 = vst [vmem:[%s271 + $0x40] sm:$0xff] %v288
                  %v290 = vld [vmem:[%s270 + $0x90] sm:$0xff]
                  %291 = vst [vmem:[%s271 + $0x48] sm:$0xff] %v290
                  %v292 = vld [vmem:[%s270 + $0xa0] sm:$0xff]
                  %293 = vst [vmem:[%s271 + $0x50] sm:$0xff] %v292
                  %v294 = vld [vmem:[%s270 + $0xb0] sm:$0xff]
                  %295 = vst [vmem:[%s271 + $0x58] sm:$0xff] %v294
                  %v296 = vld [vmem:[%s270 + $0xc0] sm:$0xff]
                  %297 = vst [vmem:[%s271 + $0x60] sm:$0xff] %v296
                  %v298 = vld [vmem:[%s270 + $0xd0] sm:$0xff]
                  %299 = vst [vmem:[%s271 + $0x68] sm:$0xff] %v298
                  %v300 = vld [vmem:[%s270 + $0xe0] sm:$0xff]
                  %301 = vst [vmem:[%s271 + $0x70] sm:$0xff] %v300
                  %v302 = vld [vmem:[%s270 + $0xf0] sm:$0xff]
                  %303 = vst [vmem:[%s271 + $0x78] sm:$0xff] %v302
                  %v304 = vld [vmem:[%s270 + $0x100] sm:$0xff]
                  %305 = vst [vmem:[%s271 + $0x80] sm:$0xff] %v304
                  %v306 = vld [vmem:[%s270 + $0x110] sm:$0xff]
                  %307 = vst [vmem:[%s271 + $0x88] sm:$0xff] %v306
                  %v308 = vld [vmem:[%s270 + $0x120] sm:$0xff]
                  %309 = vst [vmem:[%s271 + $0x90] sm:$0xff] %v308
                  %v310 = vld [vmem:[%s270 + $0x130] sm:$0xff]
                  %311 = vst [vmem:[%s271 + $0x98] sm:$0xff] %v310
                  %v312 = vld [vmem:[%s270 + $0x140] sm:$0xff]
                  %313 = vst [vmem:[%s271 + $0xa0] sm:$0xff] %v312
                  %v314 = vld [vmem:[%s270 + $0x150] sm:$0xff]
                  %315 = vst [vmem:[%s271 + $0xa8] sm:$0xff] %v314
                  %v316 = vld [vmem:[%s270 + $0x160] sm:$0xff]
                  %317 = vst [vmem:[%s271 + $0xb0] sm:$0xff] %v316
                  %v318 = vld [vmem:[%s270 + $0x170] sm:$0xff]
                  %319 = vst [vmem:[%s271 + $0xb8] sm:$0xff] %v318
                  %v320 = vld [vmem:[%s270 + $0x180] sm:$0xff]
                  %321 = vst [vmem:[%s271 + $0xc0] sm:$0xff] %v320
                  %v322 = vld [vmem:[%s270 + $0x190] sm:$0xff]
                  %323 = vst [vmem:[%s271 + $0xc8] sm:$0xff] %v322
                  %v324 = vld [vmem:[%s270 + $0x1a0] sm:$0xff]
                  %325 = vst [vmem:[%s271 + $0xd0] sm:$0xff] %v324
                  %v326 = vld [vmem:[%s270 + $0x1b0] sm:$0xff]
                  %327 = vst [vmem:[%s271 + $0xd8] sm:$0xff] %v326
                  %v328 = vld [vmem:[%s270 + $0x1c0] sm:$0xff]
                  %329 = vst [vmem:[%s271 + $0xe0] sm:$0xff] %v328
                  %v330 = vld [vmem:[%s270 + $0x1d0] sm:$0xff]
                  %331 = vst [vmem:[%s271 + $0xe8] sm:$0xff] %v330
                  %v332 = vld [vmem:[%s270 + $0x1e0] sm:$0xff]
                  %333 = vst [vmem:[%s271 + $0xf0] sm:$0xff] %v332
                  %v334 = vld [vmem:[%s270 + $0x1f0] sm:$0xff]
                  %335 = vst [vmem:[%s271 + $0xf8] sm:$0xff] %v334
                $region56: #{gcn_forward.6} parent=50 // loop_footer
                  %s269 = sadd.s32 1, %s265
                $region57: #{gcn_forward.6} parent=50 // loop_footer_branch
                  %264 = sbr.rel target = $region53
                $region58: #{gcn_forward.6} parent=50 // loop_exit
                  _
              $region51: #{gcn_forward.6} parent=35 // pred_fallthru
                _
              // Predicated region
              $region59: #{gcn_forward.6} parent=35 // pred_check
                _
              $region60: #{gcn_forward.6} parent=35 // pred_check_branch
                %337 = sbr.rel target = $region62
              $region61: #{gcn_forward.6} parent=35 // pred_region
                _
              $region62: #{gcn_forward.6} parent=35 // pred_fallthru
                _
            $region36: #{gcn_forward.6} parent=31 // pred_fallthru
              _
            // Predicated region
            $region37: #{gcn_forward.6} parent=31 // pred_check
              _
            $region38: #{gcn_forward.6} parent=31 // pred_check_branch
              %187 = sbr.rel target = $region40
            $region39: #{gcn_forward.6} parent=31 // pred_region
              %s189 = ssub.s32 256, 1
              loop: start=0, step=1, limit=1
              $region41: #{gcn_forward.6} parent=39 // loop_pre_header
                _
              $region42: #{gcn_forward.6} parent=39 // loop_header
                %s191 = sphi 0, %s195
                %p192 = scmp.ge.s32.totalorder %s191, 1
                %s196 = sphi %s181, %s181
                %s197 = sphi %s175, %s175
              $region43: #{gcn_forward.6} parent=39 // loop_header_branch
                %194 = sbr.rel (%p192) target = $region47
              $region44: #{gcn_forward.6} parent=39 // loop_body
                %v198 = vld [vmem:[%s196] sm:%s189]
                %199 = vst [vmem:[%s197] sm:%s189] %v198
                %v200 = vld [vmem:[%s196 + $0x10] sm:%s189]
                %201 = vst [vmem:[%s197 + $0x8] sm:%s189] %v200
                %v202 = vld [vmem:[%s196 + $0x20] sm:%s189]
                %203 = vst [vmem:[%s197 + $0x10] sm:%s189] %v202
                %v204 = vld [vmem:[%s196 + $0x30] sm:%s189]
                %205 = vst [vmem:[%s197 + $0x18] sm:%s189] %v204
                %v206 = vld [vmem:[%s196 + $0x40] sm:%s189]
                %207 = vst [vmem:[%s197 + $0x20] sm:%s189] %v206
                %v208 = vld [vmem:[%s196 + $0x50] sm:%s189]
                %209 = vst [vmem:[%s197 + $0x28] sm:%s189] %v208
                %v210 = vld [vmem:[%s196 + $0x60] sm:%s189]
                %211 = vst [vmem:[%s197 + $0x30] sm:%s189] %v210
                %v212 = vld [vmem:[%s196 + $0x70] sm:%s189]
                %213 = vst [vmem:[%s197 + $0x38] sm:%s189] %v212
                %v214 = vld [vmem:[%s196 + $0x80] sm:%s189]
                %215 = vst [vmem:[%s197 + $0x40] sm:%s189] %v214
                %v216 = vld [vmem:[%s196 + $0x90] sm:%s189]
                %217 = vst [vmem:[%s197 + $0x48] sm:%s189] %v216
                %v218 = vld [vmem:[%s196 + $0xa0] sm:%s189]
                %219 = vst [vmem:[%s197 + $0x50] sm:%s189] %v218
                %v220 = vld [vmem:[%s196 + $0xb0] sm:%s189]
                %221 = vst [vmem:[%s197 + $0x58] sm:%s189] %v220
                %v222 = vld [vmem:[%s196 + $0xc0] sm:%s189]
                %223 = vst [vmem:[%s197 + $0x60] sm:%s189] %v222
                %v224 = vld [vmem:[%s196 + $0xd0] sm:%s189]
                %225 = vst [vmem:[%s197 + $0x68] sm:%s189] %v224
                %v226 = vld [vmem:[%s196 + $0xe0] sm:%s189]
                %227 = vst [vmem:[%s197 + $0x70] sm:%s189] %v226
                %v228 = vld [vmem:[%s196 + $0xf0] sm:%s189]
                %229 = vst [vmem:[%s197 + $0x78] sm:%s189] %v228
                %v230 = vld [vmem:[%s196 + $0x100] sm:%s189]
                %231 = vst [vmem:[%s197 + $0x80] sm:%s189] %v230
                %v232 = vld [vmem:[%s196 + $0x110] sm:%s189]
                %233 = vst [vmem:[%s197 + $0x88] sm:%s189] %v232
                %v234 = vld [vmem:[%s196 + $0x120] sm:%s189]
                %235 = vst [vmem:[%s197 + $0x90] sm:%s189] %v234
                %v236 = vld [vmem:[%s196 + $0x130] sm:%s189]
                %237 = vst [vmem:[%s197 + $0x98] sm:%s189] %v236
                %v238 = vld [vmem:[%s196 + $0x140] sm:%s189]
                %239 = vst [vmem:[%s197 + $0xa0] sm:%s189] %v238
                %v240 = vld [vmem:[%s196 + $0x150] sm:%s189]
                %241 = vst [vmem:[%s197 + $0xa8] sm:%s189] %v240
                %v242 = vld [vmem:[%s196 + $0x160] sm:%s189]
                %243 = vst [vmem:[%s197 + $0xb0] sm:%s189] %v242
                %v244 = vld [vmem:[%s196 + $0x170] sm:%s189]
                %245 = vst [vmem:[%s197 + $0xb8] sm:%s189] %v244
                %v246 = vld [vmem:[%s196 + $0x180] sm:%s189]
                %247 = vst [vmem:[%s197 + $0xc0] sm:%s189] %v246
                %v248 = vld [vmem:[%s196 + $0x190] sm:%s189]
                %249 = vst [vmem:[%s197 + $0xc8] sm:%s189] %v248
                %v250 = vld [vmem:[%s196 + $0x1a0] sm:%s189]
                %251 = vst [vmem:[%s197 + $0xd0] sm:%s189] %v250
                %v252 = vld [vmem:[%s196 + $0x1b0] sm:%s189]
                %253 = vst [vmem:[%s197 + $0xd8] sm:%s189] %v252
                %v254 = vld [vmem:[%s196 + $0x1c0] sm:%s189]
                %255 = vst [vmem:[%s197 + $0xe0] sm:%s189] %v254
                %v256 = vld [vmem:[%s196 + $0x1d0] sm:%s189]
                %257 = vst [vmem:[%s197 + $0xe8] sm:%s189] %v256
                %v258 = vld [vmem:[%s196 + $0x1e0] sm:%s189]
                %259 = vst [vmem:[%s197 + $0xf0] sm:%s189] %v258
                %v260 = vld [vmem:[%s196 + $0x1f0] sm:%s189]
                %261 = vst [vmem:[%s197 + $0xf8] sm:%s189] %v260
              $region45: #{gcn_forward.6} parent=39 // loop_footer
                %s195 = sadd.s32 1, %s191
              $region46: #{gcn_forward.6} parent=39 // loop_footer_branch
                %190 = sbr.rel target = $region42
              $region47: #{gcn_forward.6} parent=39 // loop_exit
                _
            $region40: #{gcn_forward.6} parent=31 // pred_fallthru
              _
          $region32: #{gcn_forward.6} parent=27 // pred_fallthru
            _
          %338 = vnop
        $region28: #{gcn_forward.6} parent=23 // pred_fallthru
          _
        // Predicated region
        $region63: #{gcn_forward.6} parent=23 // pred_check
          %p339 = pneg %p70
        $region64: #{gcn_forward.6} parent=23 // pred_check_branch
          %341 = sbr.rel (%p339) target = $region66
        $region65: #{gcn_forward.6} parent=23 // pred_region
          %s342 = smul.u32 32, %s18
          %p343 = scmp.lt.s32.totalorder %s342, 63
          %s344 = scalar_select %p343, %s342, 63
          %s345 = smul.addr %s344, 4
          %s346 = scalar_lea.vmem %s1, %s345
          %s347 = smul.u32 32, %s18
        $region66: #{gcn_forward.6} parent=23 // pred_fallthru
          _
      $region24: #{gcn_forward.6} parent=5 // pred_fallthru
        _
      %p348 = scmp.le.s32.totalorder 1, %s10
      %p349 = scmp.lt.s32.totalorder %s10, 5
      %p350 = pnand %p348, %p349
      %p351 = pneg %p350
      // Predicated region
      $region67: #{gcn_forward.6} parent=5 // pred_check
        _
      $region68: #{gcn_forward.6} parent=5 // pred_check_branch
        %353 = sbr.rel (%p350) target = $region70
      $region69: #{gcn_forward.6} parent=5 // pred_region
        %s354 = ssub.s32 %s10, 1
        %s355 = sand.u32 %s37, 1
        %s356 = sand.u32 %s37, 1
        %s357 = smul.addr %s356, 256
        %s358 = scalar_lea.vmem [#allocation3], %s357
        // Predicated region
        $region71: #{gcn_forward.6} parent=69 // pred_check
          %p359 = pneg %p50
        $region72: #{gcn_forward.6} parent=69 // pred_check_branch
          %361 = sbr.rel (%p359) target = $region74
        $region73: #{gcn_forward.6} parent=69 // pred_region
          _
        $region74: #{gcn_forward.6} parent=69 // pred_fallthru
          _
        %s362 = sand.u32 %s37, 1
        %s363 = sand.u32 %s37, 1
        %s364 = smul.addr %s363, 256
        %s365 = scalar_lea.vmem [#allocation3], %s364
        %p366 = pneg %p50
        %p367 = pneg %p47
        %s368 = smul.u32 32, %s20
        %p369 = scmp.lt.s32.totalorder %s368, 63
        %s370 = scalar_select %p369, %s368, 63
        %s371 = smul.addr %s370, 4
        %s372 = scalar_lea.vmem %s1, %s371
        %p373 = pneg %p76
        %p374 = pneg %p73
        %p375 = pneg %p97
        %p376 = pneg %p94
        %p377 = pneg %p118
        %p378 = pneg %p115
        %p379 = pneg %p144
        %p380 = pneg %p141
        %s381 = smul.u32 32, %s19
        %p382 = scmp.lt.s32.totalorder %s381, 63
        %s383 = scalar_select %p382, %s381, 63
        %s384 = smul.addr %s383, 8
        %s385 = scalar_lea.vmem %s4, %s384
        %s386 = smul.u32 32, %s19
        %s387 = smul.u32 2, %s20
        %s388 = smul.u32 32, %s20
        %p389 = scmp.lt.s32.totalorder %s388, 63
        %s390 = scalar_select %p389, %s388, 63
        %s391 = smul.addr %s390, 4
        %s392 = scalar_lea.vmem %s1, %s391
        %s393 = smul.u32 32, %s20
        %s394 = smul.u32 32, %s19
        %p395 = scmp.lt.s32.totalorder %s394, 63
        %s396 = scalar_select %p395, %s394, 63
        %s397 = smul.addr %s396, 8
        %s398 = scalar_lea.vmem %s4, %s397
        %s399 = smul.u32 32, %s19
        %p400 = scmp.eq.s32.totalorder %s20, 0
        // Predicated region
        $region75: #{gcn_forward.6} parent=69 // pred_check
          %p401 = pneg %p400
        $region76: #{gcn_forward.6} parent=69 // pred_check_branch
          %403 = sbr.rel (%p401) target = $region78
        $region77: #{gcn_forward.6} parent=69 // pred_region
          %404 = vst [vmem:[#allocation2] sm:$0xff] 0.0
          %405 = vst [vmem:[#allocation2 + $0x8] sm:$0xff] 0.0
          %406 = vst [vmem:[#allocation2 + $0x10] sm:$0xff] 0.0
          %407 = vst [vmem:[#allocation2 + $0x18] sm:$0xff] 0.0
          %408 = vst [vmem:[#allocation2 + $0x20] sm:$0xff] 0.0
          %409 = vst [vmem:[#allocation2 + $0x28] sm:$0xff] 0.0
          %410 = vst [vmem:[#allocation2 + $0x30] sm:$0xff] 0.0
          %411 = vst [vmem:[#allocation2 + $0x38] sm:$0xff] 0.0
          %412 = vst [vmem:[#allocation2 + $0x40] sm:$0xff] 0.0
          %413 = vst [vmem:[#allocation2 + $0x48] sm:$0xff] 0.0
          %414 = vst [vmem:[#allocation2 + $0x50] sm:$0xff] 0.0
          %415 = vst [vmem:[#allocation2 + $0x58] sm:$0xff] 0.0
          %416 = vst [vmem:[#allocation2 + $0x60] sm:$0xff] 0.0
          %417 = vst [vmem:[#allocation2 + $0x68] sm:$0xff] 0.0
          %418 = vst [vmem:[#allocation2 + $0x70] sm:$0xff] 0.0
          %419 = vst [vmem:[#allocation2 + $0x78] sm:$0xff] 0.0
          %420 = vst [vmem:[#allocation2 + $0x80] sm:$0xff] 0.0
          %421 = vst [vmem:[#allocation2 + $0x88] sm:$0xff] 0.0
          %422 = vst [vmem:[#allocation2 + $0x90] sm:$0xff] 0.0
          %423 = vst [vmem:[#allocation2 + $0x98] sm:$0xff] 0.0
          %424 = vst [vmem:[#allocation2 + $0xa0] sm:$0xff] 0.0
          %425 = vst [vmem:[#allocation2 + $0xa8] sm:$0xff] 0.0
          %426 = vst [vmem:[#allocation2 + $0xb0] sm:$0xff] 0.0
          %427 = vst [vmem:[#allocation2 + $0xb8] sm:$0xff] 0.0
          %428 = vst [vmem:[#allocation2 + $0xc0] sm:$0xff] 0.0
          %429 = vst [vmem:[#allocation2 + $0xc8] sm:$0xff] 0.0
          %430 = vst [vmem:[#allocation2 + $0xd0] sm:$0xff] 0.0
          %431 = vst [vmem:[#allocation2 + $0xd8] sm:$0xff] 0.0
          %432 = vst [vmem:[#allocation2 + $0xe0] sm:$0xff] 0.0
          %433 = vst [vmem:[#allocation2 + $0xe8] sm:$0xff] 0.0
          %434 = vst [vmem:[#allocation2 + $0xf0] sm:$0xff] 0.0
          %435 = vst [vmem:[#allocation2 + $0xf8] sm:$0xff] 0.0
        $region78: #{gcn_forward.6} parent=69 // pred_fallthru
          _
        %v436 = vld [vmem:[#allocation2] sm:$0xff]
        %v437 = vld [vmem:[#allocation2 + $0x8] sm:$0xff]
        %v438 = vld [vmem:[#allocation2 + $0x10] sm:$0xff]
        %v439 = vld [vmem:[#allocation2 + $0x18] sm:$0xff]
        %v440 = vld [vmem:[#allocation2 + $0x20] sm:$0xff]
        %v441 = vld [vmem:[#allocation2 + $0x28] sm:$0xff]
        %v442 = vld [vmem:[#allocation2 + $0x30] sm:$0xff]
        %v443 = vld [vmem:[#allocation2 + $0x38] sm:$0xff]
        %v444 = vld [vmem:[#allocation2 + $0x40] sm:$0xff]
        %v445 = vld [vmem:[#allocation2 + $0x48] sm:$0xff]
        %v446 = vld [vmem:[#allocation2 + $0x50] sm:$0xff]
        %v447 = vld [vmem:[#allocation2 + $0x58] sm:$0xff]
        %v448 = vld [vmem:[#allocation2 + $0x60] sm:$0xff]
        %v449 = vld [vmem:[#allocation2 + $0x68] sm:$0xff]
        %v450 = vld [vmem:[#allocation2 + $0x70] sm:$0xff]
        %v451 = vld [vmem:[#allocation2 + $0x78] sm:$0xff]
        %v452 = vld [vmem:[#allocation2 + $0x80] sm:$0xff]
        %v453 = vld [vmem:[#allocation2 + $0x88] sm:$0xff]
        %v454 = vld [vmem:[#allocation2 + $0x90] sm:$0xff]
        %v455 = vld [vmem:[#allocation2 + $0x98] sm:$0xff]
        %v456 = vld [vmem:[#allocation2 + $0xa0] sm:$0xff]
        %v457 = vld [vmem:[#allocation2 + $0xa8] sm:$0xff]
        %v458 = vld [vmem:[#allocation2 + $0xb0] sm:$0xff]
        %v459 = vld [vmem:[#allocation2 + $0xb8] sm:$0xff]
        %v460 = vld [vmem:[#allocation2 + $0xc0] sm:$0xff]
        %v461 = vld [vmem:[#allocation2 + $0xc8] sm:$0xff]
        %v462 = vld [vmem:[#allocation2 + $0xd0] sm:$0xff]
        %v463 = vld [vmem:[#allocation2 + $0xd8] sm:$0xff]
        %v464 = vld [vmem:[#allocation2 + $0xe0] sm:$0xff]
        %v465 = vld [vmem:[#allocation2 + $0xe8] sm:$0xff]
        %v466 = vld [vmem:[#allocation2 + $0xf0] sm:$0xff]
        %v467 = vld [vmem:[#allocation2 + $0xf8] sm:$0xff]
        %v468 = vld [vmem:[%s358] sm:$0xff]
        %v469 = vld [vmem:[%s358 + $0x8] sm:$0xff]
        %v470 = vld [vmem:[%s358 + $0x10] sm:$0xff]
        %v471 = vld [vmem:[%s358 + $0x18] sm:$0xff]
        %v472 = vld [vmem:[%s358 + $0x20] sm:$0xff]
        %v473 = vld [vmem:[%s358 + $0x28] sm:$0xff]
        %v474 = vld [vmem:[%s358 + $0x30] sm:$0xff]
        %v475 = vld [vmem:[%s358 + $0x38] sm:$0xff]
        %v476 = vld [vmem:[%s358 + $0x40] sm:$0xff]
        %v477 = vld [vmem:[%s358 + $0x48] sm:$0xff]
        %v478 = vld [vmem:[%s358 + $0x50] sm:$0xff]
        %v479 = vld [vmem:[%s358 + $0x58] sm:$0xff]
        %v480 = vld [vmem:[%s358 + $0x60] sm:$0xff]
        %v481 = vld [vmem:[%s358 + $0x68] sm:$0xff]
        %v482 = vld [vmem:[%s358 + $0x70] sm:$0xff]
        %v483 = vld [vmem:[%s358 + $0x78] sm:$0xff]
        %v484 = vld [vmem:[%s358 + $0x80] sm:$0xff]
        %v485 = vld [vmem:[%s358 + $0x88] sm:$0xff]
        %v486 = vld [vmem:[%s358 + $0x90] sm:$0xff]
        %v487 = vld [vmem:[%s358 + $0x98] sm:$0xff]
        %v488 = vld [vmem:[%s358 + $0xa0] sm:$0xff]
        %v489 = vld [vmem:[%s358 + $0xa8] sm:$0xff]
        %v490 = vld [vmem:[%s358 + $0xb0] sm:$0xff]
        %v491 = vld [vmem:[%s358 + $0xb8] sm:$0xff]
        %v492 = vld [vmem:[%s358 + $0xc0] sm:$0xff]
        %v493 = vld [vmem:[%s358 + $0xc8] sm:$0xff]
        %v494 = vld [vmem:[%s358 + $0xd0] sm:$0xff]
        %v495 = vld [vmem:[%s358 + $0xd8] sm:$0xff]
        %v496 = vld [vmem:[%s358 + $0xe0] sm:$0xff]
        %v497 = vld [vmem:[%s358 + $0xe8] sm:$0xff]
        %v498 = vld [vmem:[%s358 + $0xf0] sm:$0xff]
        %v499 = vld [vmem:[%s358 + $0xf8] sm:$0xff]
        %v500 = vld [vmem:[%s392] sm:$0xf]
        %v501 = vld [vmem:[%s392 + $0x4] sm:$0xf]
        %v502 = vld [vmem:[%s392 + $0x8] sm:$0xf]
        %v503 = vld [vmem:[%s392 + $0xc] sm:$0xf]
        %v504 = vld [vmem:[%s392 + $0x10] sm:$0xf]
        %v505 = vld [vmem:[%s392 + $0x14] sm:$0xf]
        %v506 = vld [vmem:[%s392 + $0x18] sm:$0xf]
        %v507 = vld [vmem:[%s392 + $0x1c] sm:$0xf]
        %v508 = vld [vmem:[%s392 + $0x20] sm:$0xf]
        %v509 = vld [vmem:[%s392 + $0x24] sm:$0xf]
        %v510 = vld [vmem:[%s392 + $0x28] sm:$0xf]
        %v511 = vld [vmem:[%s392 + $0x2c] sm:$0xf]
        %v512 = vld [vmem:[%s392 + $0x30] sm:$0xf]
        %v513 = vld [vmem:[%s392 + $0x34] sm:$0xf]
        %v514 = vld [vmem:[%s392 + $0x38] sm:$0xf]
        %v515 = vld [vmem:[%s392 + $0x3c] sm:$0xf]
        %v516 = vld [vmem:[%s392 + $0x40] sm:$0xf]
        %v517 = vld [vmem:[%s392 + $0x44] sm:$0xf]
        %v518 = vld [vmem:[%s392 + $0x48] sm:$0xf]
        %v519 = vld [vmem:[%s392 + $0x4c] sm:$0xf]
        %v520 = vld [vmem:[%s392 + $0x50] sm:$0xf]
        %v521 = vld [vmem:[%s392 + $0x54] sm:$0xf]
        %v522 = vld [vmem:[%s392 + $0x58] sm:$0xf]
        %v523 = vld [vmem:[%s392 + $0x5c] sm:$0xf]
        %v524 = vld [vmem:[%s392 + $0x60] sm:$0xf]
        %v525 = vld [vmem:[%s392 + $0x64] sm:$0xf]
        %v526 = vld [vmem:[%s392 + $0x68] sm:$0xf]
        %v527 = vld [vmem:[%s392 + $0x6c] sm:$0xf]
        %v528 = vld [vmem:[%s392 + $0x70] sm:$0xf]
        %v529 = vld [vmem:[%s392 + $0x74] sm:$0xf]
        %v530 = vld [vmem:[%s392 + $0x78] sm:$0xf]
        %v531 = vld [vmem:[%s392 + $0x7c] sm:$0xf]
        %v564 = vunpack.c.l.b16 %v468
        %v565 = vunpack.c.h.b16 %v468
        %v566 = vunpack.c.l.b16 %v469
        %v567 = vunpack.c.h.b16 %v469
        %v568 = vunpack.c.l.b16 %v470
        %v569 = vunpack.c.h.b16 %v470
        %v570 = vunpack.c.l.b16 %v471
        %v571 = vunpack.c.h.b16 %v471
        %v572 = vunpack.c.l.b16 %v472
        %v573 = vunpack.c.h.b16 %v472
        %v574 = vunpack.c.l.b16 %v473
        %v575 = vunpack.c.h.b16 %v473
        %v576 = vunpack.c.l.b16 %v474
        %v577 = vunpack.c.h.b16 %v474
        %v578 = vunpack.c.l.b16 %v475
        %v579 = vunpack.c.h.b16 %v475
        %v580 = vunpack.c.l.b16 %v476
        %v581 = vunpack.c.h.b16 %v476
        %v582 = vunpack.c.l.b16 %v477
        %v583 = vunpack.c.h.b16 %v477
        %v584 = vunpack.c.l.b16 %v478
        %v585 = vunpack.c.h.b16 %v478
        %v586 = vunpack.c.l.b16 %v479
        %v587 = vunpack.c.h.b16 %v479
        %v588 = vunpack.c.l.b16 %v480
        %v589 = vunpack.c.h.b16 %v480
        %v590 = vunpack.c.l.b16 %v481
        %v591 = vunpack.c.h.b16 %v481
        %v592 = vunpack.c.l.b16 %v482
        %v593 = vunpack.c.h.b16 %v482
        %v594 = vunpack.c.l.b16 %v483
        %v595 = vunpack.c.h.b16 %v483
        %v596 = vunpack.c.l.b16 %v484
        %v597 = vunpack.c.h.b16 %v484
        %v598 = vunpack.c.l.b16 %v485
        %v599 = vunpack.c.h.b16 %v485
        %v600 = vunpack.c.l.b16 %v486
        %v601 = vunpack.c.h.b16 %v486
        %v602 = vunpack.c.l.b16 %v487
        %v603 = vunpack.c.h.b16 %v487
        %v604 = vunpack.c.l.b16 %v488
        %v605 = vunpack.c.h.b16 %v488
        %v606 = vunpack.c.l.b16 %v489
        %v607 = vunpack.c.h.b16 %v489
        %v608 = vunpack.c.l.b16 %v490
        %v609 = vunpack.c.h.b16 %v490
        %v610 = vunpack.c.l.b16 %v491
        %v611 = vunpack.c.h.b16 %v491
        %v612 = vunpack.c.l.b16 %v492
        %v613 = vunpack.c.h.b16 %v492
        %v614 = vunpack.c.l.b16 %v493
        %v615 = vunpack.c.h.b16 %v493
        %v616 = vunpack.c.l.b16 %v494
        %v617 = vunpack.c.h.b16 %v494
        %v618 = vunpack.c.l.b16 %v495
        %v619 = vunpack.c.h.b16 %v495
        %v620 = vunpack.c.l.b16 %v496
        %v621 = vunpack.c.h.b16 %v496
        %v622 = vunpack.c.l.b16 %v497
        %v623 = vunpack.c.h.b16 %v497
        %v624 = vunpack.c.l.b16 %v498
        %v625 = vunpack.c.h.b16 %v498
        %v626 = vunpack.c.l.b16 %v499
        %v627 = vunpack.c.h.b16 %v499
        %v628 = vpack.c.b16 %v566, %v564
        %v629 = vpack.c.b16 %v567, %v565
        %v630 = vpack.c.b16 %v570, %v568
        %v631 = vpack.c.b16 %v571, %v569
        %v632 = vpack.c.b16 %v574, %v572
        %v633 = vpack.c.b16 %v575, %v573
        %v634 = vpack.c.b16 %v578, %v576
        %v635 = vpack.c.b16 %v579, %v577
        %v636 = vpack.c.b16 %v582, %v580
        %v637 = vpack.c.b16 %v583, %v581
        %v638 = vpack.c.b16 %v586, %v584
        %v639 = vpack.c.b16 %v587, %v585
        %v640 = vpack.c.b16 %v590, %v588
        %v641 = vpack.c.b16 %v591, %v589
        %v642 = vpack.c.b16 %v594, %v592
        %v643 = vpack.c.b16 %v595, %v593
        %v644 = vpack.c.b16 %v598, %v596
        %v645 = vpack.c.b16 %v599, %v597
        %v646 = vpack.c.b16 %v602, %v600
        %v647 = vpack.c.b16 %v603, %v601
        %v648 = vpack.c.b16 %v606, %v604
        %v649 = vpack.c.b16 %v607, %v605
        %v650 = vpack.c.b16 %v610, %v608
        %v651 = vpack.c.b16 %v611, %v609
        %v652 = vpack.c.b16 %v614, %v612
        %v653 = vpack.c.b16 %v615, %v613
        %v654 = vpack.c.b16 %v618, %v616
        %v655 = vpack.c.b16 %v619, %v617
        %v656 = vpack.c.b16 %v622, %v620
        %v657 = vpack.c.b16 %v623, %v621
        %v658 = vpack.c.b16 %v626, %v624
        %v659 = vpack.c.b16 %v627, %v625
        %v724 = vunpack.c.l.b16 %v500
        %v725 = vunpack.c.l.b16 %v501
        %v726 = vunpack.c.l.b16 %v502
        %v727 = vunpack.c.l.b16 %v503
        %v728 = vunpack.c.l.b16 %v504
        %v729 = vunpack.c.l.b16 %v505
        %v730 = vunpack.c.l.b16 %v506
        %v731 = vunpack.c.l.b16 %v507
        %v732 = vunpack.c.l.b16 %v508
        %v733 = vunpack.c.l.b16 %v509
        %v734 = vunpack.c.l.b16 %v510
        %v735 = vunpack.c.l.b16 %v511
        %v736 = vunpack.c.l.b16 %v512
        %v737 = vunpack.c.l.b16 %v513
        %v738 = vunpack.c.l.b16 %v514
        %v739 = vunpack.c.l.b16 %v515
        %v740 = vunpack.c.l.b16 %v516
        %v741 = vunpack.c.l.b16 %v517
        %v742 = vunpack.c.l.b16 %v518
        %v743 = vunpack.c.l.b16 %v519
        %v744 = vunpack.c.l.b16 %v520
        %v745 = vunpack.c.l.b16 %v521
        %v746 = vunpack.c.l.b16 %v522
        %v747 = vunpack.c.l.b16 %v523
        %v748 = vunpack.c.l.b16 %v524
        %v749 = vunpack.c.l.b16 %v525
        %v750 = vunpack.c.l.b16 %v526
        %v751 = vunpack.c.l.b16 %v527
        %v752 = vunpack.c.l.b16 %v528
        %v753 = vunpack.c.l.b16 %v529
        %v754 = vunpack.c.l.b16 %v530
        %v755 = vunpack.c.l.b16 %v531
        %v756 = vpack.c.b16 %v725, %v724
        %v757 = vpack.c.b16 %v727, %v726
        %v758 = vpack.c.b16 %v729, %v728
        %v759 = vpack.c.b16 %v731, %v730
        %v760 = vpack.c.b16 %v733, %v732
        %v761 = vpack.c.b16 %v735, %v734
        %v762 = vpack.c.b16 %v737, %v736
        %v763 = vpack.c.b16 %v739, %v738
        %v764 = vpack.c.b16 %v741, %v740
        %v765 = vpack.c.b16 %v743, %v742
        %v766 = vpack.c.b16 %v745, %v744
        %v767 = vpack.c.b16 %v747, %v746
        %v768 = vpack.c.b16 %v749, %v748
        %v769 = vpack.c.b16 %v751, %v750
        %v770 = vpack.c.b16 %v753, %v752
        %v771 = vpack.c.b16 %v755, %v754
        %788 = vmatpush.bf16.msra.mxu0 %v763
        %789 = vmatpush.bf16.msra.mxu0 %v762
        %790 = vmatpush.bf16.msra.mxu0 %v761
        %791 = vmatpush.bf16.msra.mxu0 %v760
        %792 = vmatpush.bf16.msra.mxu0 %v759
        %793 = vmatpush.bf16.msra.mxu0 %v758
        %794 = vmatpush.bf16.msra.mxu0 %v757
        %795 = vmatpush.bf16.msra.mxu0 %v756
        %796 = vmatmul.bf16.gmra.mxu0 %v628
        %v797 = vpop.f32.mrf.mxu0
        %v798 = vadd.f32 0.0, %v797
        %v799 = vpop.f32.mrf.mxu0
        %v800 = vadd.f32 0.0, %v799
        %801 = vmatmul.bf16.gmra.mxu0 %v630
        %v802 = vpop.f32.mrf.mxu0
        %v803 = vadd.f32 0.0, %v802
        %v804 = vpop.f32.mrf.mxu0
        %v805 = vadd.f32 0.0, %v804
        %806 = vmatmul.bf16.gmra.mxu0 %v632
        %v807 = vpop.f32.mrf.mxu0
        %v808 = vadd.f32 0.0, %v807
        %v809 = vpop.f32.mrf.mxu0
        %v810 = vadd.f32 0.0, %v809
        %811 = vmatmul.bf16.gmra.mxu0 %v634
        %v812 = vpop.f32.mrf.mxu0
        %v813 = vadd.f32 0.0, %v812
        %v814 = vpop.f32.mrf.mxu0
        %v815 = vadd.f32 0.0, %v814
        %816 = vmatmul.bf16.gmra.mxu0 %v636
        %v817 = vpop.f32.mrf.mxu0
        %v818 = vadd.f32 0.0, %v817
        %v819 = vpop.f32.mrf.mxu0
        %v820 = vadd.f32 0.0, %v819
        %821 = vmatmul.bf16.gmra.mxu0 %v638
        %v822 = vpop.f32.mrf.mxu0
        %v823 = vadd.f32 0.0, %v822
        %v824 = vpop.f32.mrf.mxu0
        %v825 = vadd.f32 0.0, %v824
        %826 = vmatmul.bf16.gmra.mxu0 %v640
        %v827 = vpop.f32.mrf.mxu0
        %v828 = vadd.f32 0.0, %v827
        %v829 = vpop.f32.mrf.mxu0
        %v830 = vadd.f32 0.0, %v829
        %831 = vmatmul.bf16.gmra.mxu0 %v642
        %v832 = vpop.f32.mrf.mxu0
        %v833 = vadd.f32 0.0, %v832
        %v834 = vpop.f32.mrf.mxu0
        %v835 = vadd.f32 0.0, %v834
        %836 = vmatmul.bf16.gmra.mxu0 %v644
        %v837 = vpop.f32.mrf.mxu0
        %v838 = vadd.f32 0.0, %v837
        %v839 = vpop.f32.mrf.mxu0
        %v840 = vadd.f32 0.0, %v839
        %841 = vmatmul.bf16.gmra.mxu0 %v646
        %v842 = vpop.f32.mrf.mxu0
        %v843 = vadd.f32 0.0, %v842
        %v844 = vpop.f32.mrf.mxu0
        %v845 = vadd.f32 0.0, %v844
        %846 = vmatmul.bf16.gmra.mxu0 %v648
        %v847 = vpop.f32.mrf.mxu0
        %v848 = vadd.f32 0.0, %v847
        %v849 = vpop.f32.mrf.mxu0
        %v850 = vadd.f32 0.0, %v849
        %851 = vmatmul.bf16.gmra.mxu0 %v650
        %v852 = vpop.f32.mrf.mxu0
        %v853 = vadd.f32 0.0, %v852
        %v854 = vpop.f32.mrf.mxu0
        %v855 = vadd.f32 0.0, %v854
        %856 = vmatmul.bf16.gmra.mxu0 %v652
        %v857 = vpop.f32.mrf.mxu0
        %v858 = vadd.f32 0.0, %v857
        %v859 = vpop.f32.mrf.mxu0
        %v860 = vadd.f32 0.0, %v859
        %861 = vmatmul.bf16.gmra.mxu0 %v654
        %v862 = vpop.f32.mrf.mxu0
        %v863 = vadd.f32 0.0, %v862
        %v864 = vpop.f32.mrf.mxu0
        %v865 = vadd.f32 0.0, %v864
        %866 = vmatmul.bf16.gmra.mxu0 %v656
        %v867 = vpop.f32.mrf.mxu0
        %v868 = vadd.f32 0.0, %v867
        %v869 = vpop.f32.mrf.mxu0
        %v870 = vadd.f32 0.0, %v869
        %871 = vmatmul.bf16.gmra.mxu0 %v658
        %v872 = vpop.f32.mrf.mxu0
        %v873 = vadd.f32 0.0, %v872
        %v874 = vpop.f32.mrf.mxu0
        %v875 = vadd.f32 0.0, %v874
        %876 = vdwg.mxu0
        %877 = vmatpush.bf16.msra.mxu0 %v771
        %878 = vmatpush.bf16.msra.mxu0 %v770
        %879 = vmatpush.bf16.msra.mxu0 %v769
        %880 = vmatpush.bf16.msra.mxu0 %v768
        %881 = vmatpush.bf16.msra.mxu0 %v767
        %882 = vmatpush.bf16.msra.mxu0 %v766
        %883 = vmatpush.bf16.msra.mxu0 %v765
        %884 = vmatpush.bf16.msra.mxu0 %v764
        %885 = vmatmul.bf16.gmra.mxu0 %v629
        %v886 = vpop.f32.mrf.mxu0
        %v887 = vadd.f32 %v798, %v886
        %v888 = vpop.f32.mrf.mxu0
        %v889 = vadd.f32 %v800, %v888
        %890 = vmatmul.bf16.gmra.mxu0 %v631
        %v891 = vpop.f32.mrf.mxu0
        %v892 = vadd.f32 %v803, %v891
        %v893 = vpop.f32.mrf.mxu0
        %v894 = vadd.f32 %v805, %v893
        %895 = vmatmul.bf16.gmra.mxu0 %v633
        %v896 = vpop.f32.mrf.mxu0
        %v897 = vadd.f32 %v808, %v896
        %v898 = vpop.f32.mrf.mxu0
        %v899 = vadd.f32 %v810, %v898
        %900 = vmatmul.bf16.gmra.mxu0 %v635
        %v901 = vpop.f32.mrf.mxu0
        %v902 = vadd.f32 %v813, %v901
        %v903 = vpop.f32.mrf.mxu0
        %v904 = vadd.f32 %v815, %v903
        %905 = vmatmul.bf16.gmra.mxu0 %v637
        %v906 = vpop.f32.mrf.mxu0
        %v907 = vadd.f32 %v818, %v906
        %v908 = vpop.f32.mrf.mxu0
        %v909 = vadd.f32 %v820, %v908
        %910 = vmatmul.bf16.gmra.mxu0 %v639
        %v911 = vpop.f32.mrf.mxu0
        %v912 = vadd.f32 %v823, %v911
        %v913 = vpop.f32.mrf.mxu0
        %v914 = vadd.f32 %v825, %v913
        %915 = vmatmul.bf16.gmra.mxu0 %v641
        %v916 = vpop.f32.mrf.mxu0
        %v917 = vadd.f32 %v828, %v916
        %v918 = vpop.f32.mrf.mxu0
        %v919 = vadd.f32 %v830, %v918
        %920 = vmatmul.bf16.gmra.mxu0 %v643
        %v921 = vpop.f32.mrf.mxu0
        %v922 = vadd.f32 %v833, %v921
        %v923 = vpop.f32.mrf.mxu0
        %v924 = vadd.f32 %v835, %v923
        %925 = vmatmul.bf16.gmra.mxu0 %v645
        %v926 = vpop.f32.mrf.mxu0
        %v927 = vadd.f32 %v838, %v926
        %v928 = vpop.f32.mrf.mxu0
        %v929 = vadd.f32 %v840, %v928
        %930 = vmatmul.bf16.gmra.mxu0 %v647
        %v931 = vpop.f32.mrf.mxu0
        %v932 = vadd.f32 %v843, %v931
        %v933 = vpop.f32.mrf.mxu0
        %v934 = vadd.f32 %v845, %v933
        %935 = vmatmul.bf16.gmra.mxu0 %v649
        %v936 = vpop.f32.mrf.mxu0
        %v937 = vadd.f32 %v848, %v936
        %v938 = vpop.f32.mrf.mxu0
        %v939 = vadd.f32 %v850, %v938
        %940 = vmatmul.bf16.gmra.mxu0 %v651
        %v941 = vpop.f32.mrf.mxu0
        %v942 = vadd.f32 %v853, %v941
        %v943 = vpop.f32.mrf.mxu0
        %v944 = vadd.f32 %v855, %v943
        %945 = vmatmul.bf16.gmra.mxu0 %v653
        %v946 = vpop.f32.mrf.mxu0
        %v947 = vadd.f32 %v858, %v946
        %v948 = vpop.f32.mrf.mxu0
        %v949 = vadd.f32 %v860, %v948
        %950 = vmatmul.bf16.gmra.mxu0 %v655
        %v951 = vpop.f32.mrf.mxu0
        %v952 = vadd.f32 %v863, %v951
        %v953 = vpop.f32.mrf.mxu0
        %v954 = vadd.f32 %v865, %v953
        %955 = vmatmul.bf16.gmra.mxu0 %v657
        %v956 = vpop.f32.mrf.mxu0
        %v957 = vadd.f32 %v868, %v956
        %v958 = vpop.f32.mrf.mxu0
        %v959 = vadd.f32 %v870, %v958
        %960 = vmatmul.bf16.gmra.mxu0 %v659
        %v961 = vpop.f32.mrf.mxu0
        %v962 = vadd.f32 %v873, %v961
        %v963 = vpop.f32.mrf.mxu0
        %v964 = vadd.f32 %v875, %v963
        %965 = vdwg.mxu0
        %v966 = vadd.f32 %v436, %v887
        %v967 = vadd.f32 %v437, %v889
        %v968 = vadd.f32 %v438, %v892
        %v969 = vadd.f32 %v439, %v894
        %v970 = vadd.f32 %v440, %v897
        %v971 = vadd.f32 %v441, %v899
        %v972 = vadd.f32 %v442, %v902
        %v973 = vadd.f32 %v443, %v904
        %v974 = vadd.f32 %v444, %v907
        %v975 = vadd.f32 %v445, %v909
        %v976 = vadd.f32 %v446, %v912
        %v977 = vadd.f32 %v447, %v914
        %v978 = vadd.f32 %v448, %v917
        %v979 = vadd.f32 %v449, %v919
        %v980 = vadd.f32 %v450, %v922
        %v981 = vadd.f32 %v451, %v924
        %v982 = vadd.f32 %v452, %v927
        %v983 = vadd.f32 %v453, %v929
        %v984 = vadd.f32 %v454, %v932
        %v985 = vadd.f32 %v455, %v934
        %v986 = vadd.f32 %v456, %v937
        %v987 = vadd.f32 %v457, %v939
        %v988 = vadd.f32 %v458, %v942
        %v989 = vadd.f32 %v459, %v944
        %v990 = vadd.f32 %v460, %v947
        %v991 = vadd.f32 %v461, %v949
        %v992 = vadd.f32 %v462, %v952
        %v993 = vadd.f32 %v463, %v954
        %v994 = vadd.f32 %v464, %v957
        %v995 = vadd.f32 %v465, %v959
        %v996 = vadd.f32 %v466, %v962
        %v997 = vadd.f32 %v467, %v964
        %998 = vst [vmem:[#allocation2] sm:$0xff] %v966
        %999 = vst [vmem:[#allocation2 + $0x8] sm:$0xff] %v967
        %1000 = vst [vmem:[#allocation2 + $0x10] sm:$0xff] %v968
        %1001 = vst [vmem:[#allocation2 + $0x18] sm:$0xff] %v969
        %1002 = vst [vmem:[#allocation2 + $0x20] sm:$0xff] %v970
        %1003 = vst [vmem:[#allocation2 + $0x28] sm:$0xff] %v971
        %1004 = vst [vmem:[#allocation2 + $0x30] sm:$0xff] %v972
        %1005 = vst [vmem:[#allocation2 + $0x38] sm:$0xff] %v973
        %1006 = vst [vmem:[#allocation2 + $0x40] sm:$0xff] %v974
        %1007 = vst [vmem:[#allocation2 + $0x48] sm:$0xff] %v975
        %1008 = vst [vmem:[#allocation2 + $0x50] sm:$0xff] %v976
        %1009 = vst [vmem:[#allocation2 + $0x58] sm:$0xff] %v977
        %1010 = vst [vmem:[#allocation2 + $0x60] sm:$0xff] %v978
        %1011 = vst [vmem:[#allocation2 + $0x68] sm:$0xff] %v979
        %1012 = vst [vmem:[#allocation2 + $0x70] sm:$0xff] %v980
        %1013 = vst [vmem:[#allocation2 + $0x78] sm:$0xff] %v981
        %1014 = vst [vmem:[#allocation2 + $0x80] sm:$0xff] %v982
        %1015 = vst [vmem:[#allocation2 + $0x88] sm:$0xff] %v983
        %1016 = vst [vmem:[#allocation2 + $0x90] sm:$0xff] %v984
        %1017 = vst [vmem:[#allocation2 + $0x98] sm:$0xff] %v985
        %1018 = vst [vmem:[#allocation2 + $0xa0] sm:$0xff] %v986
        %1019 = vst [vmem:[#allocation2 + $0xa8] sm:$0xff] %v987
        %1020 = vst [vmem:[#allocation2 + $0xb0] sm:$0xff] %v988
        %1021 = vst [vmem:[#allocation2 + $0xb8] sm:$0xff] %v989
        %1022 = vst [vmem:[#allocation2 + $0xc0] sm:$0xff] %v990
        %1023 = vst [vmem:[#allocation2 + $0xc8] sm:$0xff] %v991
        %1024 = vst [vmem:[#allocation2 + $0xd0] sm:$0xff] %v992
        %1025 = vst [vmem:[#allocation2 + $0xd8] sm:$0xff] %v993
        %1026 = vst [vmem:[#allocation2 + $0xe0] sm:$0xff] %v994
        %1027 = vst [vmem:[#allocation2 + $0xe8] sm:$0xff] %v995
        %1028 = vst [vmem:[#allocation2 + $0xf0] sm:$0xff] %v996
        %1029 = vst [vmem:[#allocation2 + $0xf8] sm:$0xff] %v997
        %p1030 = scmp.eq.s32.totalorder %s20, 1
        // Predicated region
        $region79: #{gcn_forward.6} parent=69 // pred_check
          %p1031 = pneg %p1030
        $region80: #{gcn_forward.6} parent=69 // pred_check_branch
          %1033 = sbr.rel (%p1031) target = $region82
        $region81: #{gcn_forward.6} parent=69 // pred_region
          %v1034 = vld [vmem:[#allocation2] sm:$0xff]
          %v1035 = vld [vmem:[#allocation2 + $0x8] sm:$0xff]
          %v1036 = vld [vmem:[#allocation2 + $0x10] sm:$0xff]
          %v1037 = vld [vmem:[#allocation2 + $0x18] sm:$0xff]
          %v1038 = vld [vmem:[#allocation2 + $0x20] sm:$0xff]
          %v1039 = vld [vmem:[#allocation2 + $0x28] sm:$0xff]
          %v1040 = vld [vmem:[#allocation2 + $0x30] sm:$0xff]
          %v1041 = vld [vmem:[#allocation2 + $0x38] sm:$0xff]
          %v1042 = vld [vmem:[#allocation2 + $0x40] sm:$0xff]
          %v1043 = vld [vmem:[#allocation2 + $0x48] sm:$0xff]
          %v1044 = vld [vmem:[#allocation2 + $0x50] sm:$0xff]
          %v1045 = vld [vmem:[#allocation2 + $0x58] sm:$0xff]
          %v1046 = vld [vmem:[#allocation2 + $0x60] sm:$0xff]
          %v1047 = vld [vmem:[#allocation2 + $0x68] sm:$0xff]
          %v1048 = vld [vmem:[#allocation2 + $0x70] sm:$0xff]
          %v1049 = vld [vmem:[#allocation2 + $0x78] sm:$0xff]
          %v1050 = vld [vmem:[#allocation2 + $0x80] sm:$0xff]
          %v1051 = vld [vmem:[#allocation2 + $0x88] sm:$0xff]
          %v1052 = vld [vmem:[#allocation2 + $0x90] sm:$0xff]
          %v1053 = vld [vmem:[#allocation2 + $0x98] sm:$0xff]
          %v1054 = vld [vmem:[#allocation2 + $0xa0] sm:$0xff]
          %v1055 = vld [vmem:[#allocation2 + $0xa8] sm:$0xff]
          %v1056 = vld [vmem:[#allocation2 + $0xb0] sm:$0xff]
          %v1057 = vld [vmem:[#allocation2 + $0xb8] sm:$0xff]
          %v1058 = vld [vmem:[#allocation2 + $0xc0] sm:$0xff]
          %v1059 = vld [vmem:[#allocation2 + $0xc8] sm:$0xff]
          %v1060 = vld [vmem:[#allocation2 + $0xd0] sm:$0xff]
          %v1061 = vld [vmem:[#allocation2 + $0xd8] sm:$0xff]
          %v1062 = vld [vmem:[#allocation2 + $0xe0] sm:$0xff]
          %v1063 = vld [vmem:[#allocation2 + $0xe8] sm:$0xff]
          %v1064 = vld [vmem:[#allocation2 + $0xf0] sm:$0xff]
          %v1065 = vld [vmem:[#allocation2 + $0xf8] sm:$0xff]
          %v1066 = vld [vmem:[%s2] sm:$0x1]
          %v1068 = vperm.slane %v1066, 0
          %v1070 = vmul.f32 %v1034, %v1068
          %v1071 = vmul.f32 %v1035, %v1068
          %v1072 = vmul.f32 %v1036, %v1068
          %v1073 = vmul.f32 %v1037, %v1068
          %v1074 = vmul.f32 %v1038, %v1068
          %v1075 = vmul.f32 %v1039, %v1068
          %v1076 = vmul.f32 %v1040, %v1068
          %v1077 = vmul.f32 %v1041, %v1068
          %v1078 = vmul.f32 %v1042, %v1068
          %v1079 = vmul.f32 %v1043, %v1068
          %v1080 = vmul.f32 %v1044, %v1068
          %v1081 = vmul.f32 %v1045, %v1068
          %v1082 = vmul.f32 %v1046, %v1068
          %v1083 = vmul.f32 %v1047, %v1068
          %v1084 = vmul.f32 %v1048, %v1068
          %v1085 = vmul.f32 %v1049, %v1068
          %v1086 = vmul.f32 %v1050, %v1068
          %v1087 = vmul.f32 %v1051, %v1068
          %v1088 = vmul.f32 %v1052, %v1068
          %v1089 = vmul.f32 %v1053, %v1068
          %v1090 = vmul.f32 %v1054, %v1068
          %v1091 = vmul.f32 %v1055, %v1068
          %v1092 = vmul.f32 %v1056, %v1068
          %v1093 = vmul.f32 %v1057, %v1068
          %v1094 = vmul.f32 %v1058, %v1068
          %v1095 = vmul.f32 %v1059, %v1068
          %v1096 = vmul.f32 %v1060, %v1068
          %v1097 = vmul.f32 %v1061, %v1068
          %v1098 = vmul.f32 %v1062, %v1068
          %v1099 = vmul.f32 %v1063, %v1068
          %v1100 = vmul.f32 %v1064, %v1068
          %v1101 = vmul.f32 %v1065, %v1068
          %v1102 = vld [vmem:[%s3] sm:$0x1]
          %v1104 = vperm.slane %v1102, 0
          %v1106 = vadd.f32 %v1070, %v1104
          %v1107 = vadd.f32 %v1071, %v1104
          %v1108 = vadd.f32 %v1072, %v1104
          %v1109 = vadd.f32 %v1073, %v1104
          %v1110 = vadd.f32 %v1074, %v1104
          %v1111 = vadd.f32 %v1075, %v1104
          %v1112 = vadd.f32 %v1076, %v1104
          %v1113 = vadd.f32 %v1077, %v1104
          %v1114 = vadd.f32 %v1078, %v1104
          %v1115 = vadd.f32 %v1079, %v1104
          %v1116 = vadd.f32 %v1080, %v1104
          %v1117 = vadd.f32 %v1081, %v1104
          %v1118 = vadd.f32 %v1082, %v1104
          %v1119 = vadd.f32 %v1083, %v1104
          %v1120 = vadd.f32 %v1084, %v1104
          %v1121 = vadd.f32 %v1085, %v1104
          %v1122 = vadd.f32 %v1086, %v1104
          %v1123 = vadd.f32 %v1087, %v1104
          %v1124 = vadd.f32 %v1088, %v1104
          %v1125 = vadd.f32 %v1089, %v1104
          %v1126 = vadd.f32 %v1090, %v1104
          %v1127 = vadd.f32 %v1091, %v1104
          %v1128 = vadd.f32 %v1092, %v1104
          %v1129 = vadd.f32 %v1093, %v1104
          %v1130 = vadd.f32 %v1094, %v1104
          %v1131 = vadd.f32 %v1095, %v1104
          %v1132 = vadd.f32 %v1096, %v1104
          %v1133 = vadd.f32 %v1097, %v1104
          %v1134 = vadd.f32 %v1098, %v1104
          %v1135 = vadd.f32 %v1099, %v1104
          %v1136 = vadd.f32 %v1100, %v1104
          %v1137 = vadd.f32 %v1101, %v1104
          %v1138 = vmax.f32 %v1106, 0.0
          %v1139 = vmax.f32 %v1107, 0.0
          %v1140 = vmax.f32 %v1108, 0.0
          %v1141 = vmax.f32 %v1109, 0.0
          %v1142 = vmax.f32 %v1110, 0.0
          %v1143 = vmax.f32 %v1111, 0.0
          %v1144 = vmax.f32 %v1112, 0.0
          %v1145 = vmax.f32 %v1113, 0.0
          %v1146 = vmax.f32 %v1114, 0.0
          %v1147 = vmax.f32 %v1115, 0.0
          %v1148 = vmax.f32 %v1116, 0.0
          %v1149 = vmax.f32 %v1117, 0.0
          %v1150 = vmax.f32 %v1118, 0.0
          %v1151 = vmax.f32 %v1119, 0.0
          %v1152 = vmax.f32 %v1120, 0.0
          %v1153 = vmax.f32 %v1121, 0.0
          %v1154 = vmax.f32 %v1122, 0.0
          %v1155 = vmax.f32 %v1123, 0.0
          %v1156 = vmax.f32 %v1124, 0.0
          %v1157 = vmax.f32 %v1125, 0.0
          %v1158 = vmax.f32 %v1126, 0.0
          %v1159 = vmax.f32 %v1127, 0.0
          %v1160 = vmax.f32 %v1128, 0.0
          %v1161 = vmax.f32 %v1129, 0.0
          %v1162 = vmax.f32 %v1130, 0.0
          %v1163 = vmax.f32 %v1131, 0.0
          %v1164 = vmax.f32 %v1132, 0.0
          %v1165 = vmax.f32 %v1133, 0.0
          %v1166 = vmax.f32 %v1134, 0.0
          %v1167 = vmax.f32 %v1135, 0.0
          %v1168 = vmax.f32 %v1136, 0.0
          %v1169 = vmax.f32 %v1137, 0.0
          %1170 = vst [vmem:[%s398] sm:$0xff] %v1138
          %1171 = vst [vmem:[%s398 + $0x8] sm:$0xff] %v1139
          %1172 = vst [vmem:[%s398 + $0x10] sm:$0xff] %v1140
          %1173 = vst [vmem:[%s398 + $0x18] sm:$0xff] %v1141
          %1174 = vst [vmem:[%s398 + $0x20] sm:$0xff] %v1142
          %1175 = vst [vmem:[%s398 + $0x28] sm:$0xff] %v1143
          %1176 = vst [vmem:[%s398 + $0x30] sm:$0xff] %v1144
          %1177 = vst [vmem:[%s398 + $0x38] sm:$0xff] %v1145
          %1178 = vst [vmem:[%s398 + $0x40] sm:$0xff] %v1146
          %1179 = vst [vmem:[%s398 + $0x48] sm:$0xff] %v1147
          %1180 = vst [vmem:[%s398 + $0x50] sm:$0xff] %v1148
          %1181 = vst [vmem:[%s398 + $0x58] sm:$0xff] %v1149
          %1182 = vst [vmem:[%s398 + $0x60] sm:$0xff] %v1150
          %1183 = vst [vmem:[%s398 + $0x68] sm:$0xff] %v1151
          %1184 = vst [vmem:[%s398 + $0x70] sm:$0xff] %v1152
          %1185 = vst [vmem:[%s398 + $0x78] sm:$0xff] %v1153
          %1186 = vst [vmem:[%s398 + $0x80] sm:$0xff] %v1154
          %1187 = vst [vmem:[%s398 + $0x88] sm:$0xff] %v1155
          %1188 = vst [vmem:[%s398 + $0x90] sm:$0xff] %v1156
          %1189 = vst [vmem:[%s398 + $0x98] sm:$0xff] %v1157
          %1190 = vst [vmem:[%s398 + $0xa0] sm:$0xff] %v1158
          %1191 = vst [vmem:[%s398 + $0xa8] sm:$0xff] %v1159
          %1192 = vst [vmem:[%s398 + $0xb0] sm:$0xff] %v1160
          %1193 = vst [vmem:[%s398 + $0xb8] sm:$0xff] %v1161
          %1194 = vst [vmem:[%s398 + $0xc0] sm:$0xff] %v1162
          %1195 = vst [vmem:[%s398 + $0xc8] sm:$0xff] %v1163
          %1196 = vst [vmem:[%s398 + $0xd0] sm:$0xff] %v1164
          %1197 = vst [vmem:[%s398 + $0xd8] sm:$0xff] %v1165
          %1198 = vst [vmem:[%s398 + $0xe0] sm:$0xff] %v1166
          %1199 = vst [vmem:[%s398 + $0xe8] sm:$0xff] %v1167
          %1200 = vst [vmem:[%s398 + $0xf0] sm:$0xff] %v1168
          %1201 = vst [vmem:[%s398 + $0xf8] sm:$0xff] %v1169
        $region82: #{gcn_forward.6} parent=69 // pred_fallthru
          _
        %s1202 = smul.u32 32, %s19
        %p1203 = scmp.lt.s32.totalorder %s1202, 63
        %s1204 = scalar_select %p1203, %s1202, 63
        %s1205 = smul.addr %s1204, 8
        %s1206 = scalar_lea.vmem %s4, %s1205
        // Predicated region
        $region83: #{gcn_forward.6} parent=69 // pred_check
          %p1207 = pneg %p141
        $region84: #{gcn_forward.6} parent=69 // pred_check_branch
          %1209 = sbr.rel (%p1207) target = $region86
        $region85: #{gcn_forward.6} parent=69 // pred_region
          %s1210 = smul.u32 32, %s19
        $region86: #{gcn_forward.6} parent=69 // pred_fallthru
          _
      $region70: #{gcn_forward.6} parent=5 // pred_fallthru
        _
      %p1211 = scmp.le.s32.totalorder 2, %s10
      // Predicated region
      $region87: #{gcn_forward.6} parent=5 // pred_check
        %p1212 = pneg %p1211
      $region88: #{gcn_forward.6} parent=5 // pred_check_branch
        %1214 = sbr.rel (%p1212) target = $region90
      $region89: #{gcn_forward.6} parent=5 // pred_region
        %s1215 = ssub.s32 %s10, 2
        // Predicated region
        $region91: #{gcn_forward.6} parent=89 // pred_check
          %p1216 = pneg %p147
        $region92: #{gcn_forward.6} parent=89 // pred_check_branch
          %1218 = sbr.rel (%p1216) target = $region94
        $region93: #{gcn_forward.6} parent=89 // pred_region
          %s1219 = smul.u32 32, %s21
          %p1220 = scmp.lt.s32.totalorder %s1219, 63
          %s1221 = scalar_select %p1220, %s1219, 63
          %s1222 = smul.addr %s1221, 8
          %s1223 = scalar_lea.vmem %s4, %s1222
        $region94: #{gcn_forward.6} parent=89 // pred_fallthru
          _
      $region90: #{gcn_forward.6} parent=5 // pred_fallthru
        _
    $region6: #{gcn_forward.6} parent=1 // loop_footer
      %s14 = sadd.s32 1, %s10
    $region7: #{gcn_forward.6} parent=1 // loop_footer_branch
      %9 = sbr.rel target = $region3
    $region8: #{gcn_forward.6} parent=1 // loop_exit
      _

// kernel: gcn_forward.9
$region0: #{gcn_forward.9}
  #allocation0 [shape = 'u32[]', space=smem, size = 0x4, offset = 0x4, fixed_abs, tag = 'smem constant byte address 0x4 - core index']
  #allocation1 [shape = 'u32[72,128]{1,0:T(1,128)}', space=vmem, size = 0x9000, scoped, tag = 'internal scratch']
  %s0 = inlined_call_operand.vmem [shape: f32[64,128], index: 0, kind: input, shape index: {}]
  %s1 = inlined_call_operand.vmem [shape: f32[64,128], index: 1, kind: input, shape index: {}]
  %s2 = inlined_call_operand.vmem [shape: f32[64,128], index: 2, kind: input, shape index: {}]
  %s3 = inlined_call_operand.vmem [shape: f32[128,128], index: 3, kind: input, shape index: {}]
  %s4 = inlined_call_operand.vmem [shape: f32[128,128], index: 4, kind: input, shape index: {}]
  %s5 = inlined_call_operand.vmem [shape: f32[1,128], index: 5, kind: input, shape index: {}]
  %s6 = inlined_call_operand.vmem [shape: f32[128,128], index: 6, kind: output, shape index: {}]
  %s7 = sld [smem:[#allocation0]]
  $region34: #{gcn_forward.9} parent=0
    _
  %s9 = ssub.s32 1, %s7
  %s10 = scalar_select 0, %s9, %s7
  // Predicated region
  $region2: #{gcn_forward.9} parent=0 // pred_check
    _
  $region3: #{gcn_forward.9} parent=0 // pred_check_branch
    %12 = sbr.rel (0) target = $region5
  $region4: #{gcn_forward.9} parent=0 // pred_region
    _
  $region5: #{gcn_forward.9} parent=0 // pred_fallthru
    _
  // Predicated region
  $region6: #{gcn_forward.9} parent=0 // pred_check
    _
  $region7: #{gcn_forward.9} parent=0 // pred_check_branch
    %14 = sbr.rel (0) target = $region9
  $region8: #{gcn_forward.9} parent=0 // pred_region
    _
  $region9: #{gcn_forward.9} parent=0 // pred_fallthru
    _
  // Predicated region
  $region10: #{gcn_forward.9} parent=0 // pred_check
    _
  $region11: #{gcn_forward.9} parent=0 // pred_check_branch
    %16 = sbr.rel (0) target = $region13
  $region12: #{gcn_forward.9} parent=0 // pred_region
    _
  $region13: #{gcn_forward.9} parent=0 // pred_fallthru
    _
  // Predicated region
  $region14: #{gcn_forward.9} parent=0 // pred_check
    _
  $region15: #{gcn_forward.9} parent=0 // pred_check_branch
    %18 = sbr.rel (0) target = $region17
  $region16: #{gcn_forward.9} parent=0 // pred_region
    _
  $region17: #{gcn_forward.9} parent=0 // pred_fallthru
    _
  // Predicated region
  $region18: #{gcn_forward.9} parent=0 // pred_check
    _
  $region19: #{gcn_forward.9} parent=0 // pred_check_branch
    %20 = sbr.rel (0) target = $region21
  $region20: #{gcn_forward.9} parent=0 // pred_region
    _
  $region21: #{gcn_forward.9} parent=0 // pred_fallthru
    _
  // Predicated region
  $region22: #{gcn_forward.9} parent=0 // pred_check
    _
  $region23: #{gcn_forward.9} parent=0 // pred_check_branch
    %22 = sbr.rel (0) target = $region25
  $region24: #{gcn_forward.9} parent=0 // pred_region
    _
  $region25: #{gcn_forward.9} parent=0 // pred_fallthru
    _
  %v23 = vld [vmem:[%s0] sm:$0xff]
  %v24 = vld [vmem:[%s0 + $0x8] sm:$0xff]
  %v25 = vld [vmem:[%s0 + $0x10] sm:$0xff]
  %v26 = vld [vmem:[%s0 + $0x18] sm:$0xff]
  %v27 = vld [vmem:[%s0 + $0x20] sm:$0xff]
  %v28 = vld [vmem:[%s0 + $0x28] sm:$0xff]
  %v29 = vld [vmem:[%s0 + $0x30] sm:$0xff]
  %v30 = vld [vmem:[%s0 + $0x38] sm:$0xff]
  %v31 = vld [vmem:[%s1] sm:$0xff]
  %v32 = vld [vmem:[%s1 + $0x8] sm:$0xff]
  %v33 = vld [vmem:[%s1 + $0x10] sm:$0xff]
  %v34 = vld [vmem:[%s1 + $0x18] sm:$0xff]
  %v35 = vld [vmem:[%s1 + $0x20] sm:$0xff]
  %v36 = vld [vmem:[%s1 + $0x28] sm:$0xff]
  %v37 = vld [vmem:[%s1 + $0x30] sm:$0xff]
  %v38 = vld [vmem:[%s1 + $0x38] sm:$0xff]
  %39 = vxpose.xlu0.b32.start [1/16] %v31, 128
  %40 = vxpose.xlu0.b32.cont [2/16] %v32, 128
  %41 = vxpose.xlu0.b32.cont [3/16] %v33, 128
  %42 = vxpose.xlu0.b32.cont [4/16] %v34, 128
  %43 = vxpose.xlu0.b32.cont [5/16] %v35, 128
  %44 = vxpose.xlu0.b32.cont [6/16] %v36, 128
  %45 = vxpose.xlu0.b32.cont [7/16] %v37, 128
  %46 = vxpose.xlu0.b32.cont [8/16] %v38, 128
  %47 = vxpose.xlu0.b32.cont [9/16] 0.0, 128
  %48 = vxpose.xlu0.b32.cont [10/16] 0.0, 128
  %49 = vxpose.xlu0.b32.cont [11/16] 0.0, 128
  %50 = vxpose.xlu0.b32.cont [12/16] 0.0, 128
  %51 = vxpose.xlu0.b32.cont [13/16] 0.0, 128
  %52 = vxpose.xlu0.b32.cont [14/16] 0.0, 128
  %53 = vxpose.xlu0.b32.cont [15/16] 0.0, 128
  %54 = vxpose.xlu0.b32.end [16/16] 0.0, 128
  %v55 = vpop.trf.xlu0
  %v56 = vpop.trf.xlu0
  %v57 = vpop.trf.xlu0
  %v58 = vpop.trf.xlu0
  %v59 = vpop.trf.xlu0
  %v60 = vpop.trf.xlu0
  %v61 = vpop.trf.xlu0
  %v62 = vpop.trf.xlu0
  %v63 = vpop.trf.xlu0
  %v64 = vpop.trf.xlu0
  %v65 = vpop.trf.xlu0
  %v66 = vpop.trf.xlu0
  %v67 = vpop.trf.xlu0
  %v68 = vpop.trf.xlu0
  %v69 = vpop.trf.xlu0
  %v70 = vpop.trf.xlu0
  %vm71 = vcmask 523264
  %v73 = vsel %vm71, %v55, 0
  %v76 = vsel %vm71, %v56, 0
  %v79 = vsel %vm71, %v57, 0
  %v82 = vsel %vm71, %v58, 0
  %v85 = vsel %vm71, %v59, 0
  %v88 = vsel %vm71, %v60, 0
  %v91 = vsel %vm71, %v61, 0
  %v94 = vsel %vm71, %v62, 0
  %v97 = vsel %vm71, %v63, 0
  %v100 = vsel %vm71, %v64, 0
  %v103 = vsel %vm71, %v65, 0
  %v106 = vsel %vm71, %v66, 0
  %v109 = vsel %vm71, %v67, 0
  %v112 = vsel %vm71, %v68, 0
  %v115 = vsel %vm71, %v69, 0
  %v118 = vsel %vm71, %v70, 0
  %120 = vmatpush.msra.mxu0 0.0
  %121 = vmatpush.msra.mxu0 0.0
  %122 = vmatpush.msra.mxu0 0.0
  %123 = vmatpush.msra.mxu0 0.0
  %124 = vmatpush.msra.mxu0 0.0
  %125 = vmatpush.msra.mxu0 0.0
  %126 = vmatpush.msra.mxu0 0.0
  %127 = vmatpush.msra.mxu0 0.0
  %128 = vmatpush.msra.mxu0 %v30
  %129 = vmatpush.msra.mxu0 %v29
  %130 = vmatpush.msra.mxu0 %v28
  %131 = vmatpush.msra.mxu0 %v27
  %132 = vmatpush.msra.mxu0 %v26
  %133 = vmatpush.msra.mxu0 %v25
  %134 = vmatpush.msra.mxu0 %v24
  %135 = vmatpush.msra.mxu0 %v23
  %136 = vmatmul.f32.gmra.mxu0 %v73
  %v137 = vpop.f32.mrf.mxu0
  %v138 = vadd.f32 0.0, %v137
  %139 = vmatmul.f32.gmra.mxu0 %v76
  %v140 = vpop.f32.mrf.mxu0
  %v141 = vadd.f32 0.0, %v140
  %142 = vmatmul.f32.gmra.mxu0 %v79
  %v143 = vpop.f32.mrf.mxu0
  %v144 = vadd.f32 0.0, %v143
  %145 = vmatmul.f32.gmra.mxu0 %v82
  %v146 = vpop.f32.mrf.mxu0
  %v147 = vadd.f32 0.0, %v146
  %148 = vmatmul.f32.gmra.mxu0 %v85
  %v149 = vpop.f32.mrf.mxu0
  %v150 = vadd.f32 0.0, %v149
  %151 = vmatmul.f32.gmra.mxu0 %v88
  %v152 = vpop.f32.mrf.mxu0
  %v153 = vadd.f32 0.0, %v152
  %154 = vmatmul.f32.gmra.mxu0 %v91
  %v155 = vpop.f32.mrf.mxu0
  %v156 = vadd.f32 0.0, %v155
  %157 = vmatmul.f32.gmra.mxu0 %v94
  %v158 = vpop.f32.mrf.mxu0
  %v159 = vadd.f32 0.0, %v158
  %160 = vmatmul.f32.gmra.mxu0 %v97
  %v161 = vpop.f32.mrf.mxu0
  %v162 = vadd.f32 0.0, %v161
  %163 = vmatmul.f32.gmra.mxu0 %v100
  %v164 = vpop.f32.mrf.mxu0
  %v165 = vadd.f32 0.0, %v164
  %166 = vmatmul.f32.gmra.mxu0 %v103
  %v167 = vpop.f32.mrf.mxu0
  %v168 = vadd.f32 0.0, %v167
  %169 = vmatmul.f32.gmra.mxu0 %v106
  %v170 = vpop.f32.mrf.mxu0
  %v171 = vadd.f32 0.0, %v170
  %172 = vmatmul.f32.gmra.mxu0 %v109
  %v173 = vpop.f32.mrf.mxu0
  %v174 = vadd.f32 0.0, %v173
  %175 = vmatmul.f32.gmra.mxu0 %v112
  %v176 = vpop.f32.mrf.mxu0
  %v177 = vadd.f32 0.0, %v176
  %178 = vmatmul.f32.gmra.mxu0 %v115
  %v179 = vpop.f32.mrf.mxu0
  %v180 = vadd.f32 0.0, %v179
  %181 = vmatmul.f32.gmra.mxu0 %v118
  %v182 = vpop.f32.mrf.mxu0
  %v183 = vadd.f32 0.0, %v182
  %184 = vdwg.mxu0
  %v185 = vld [vmem:[%s2] sm:$0xff]
  %v186 = vld [vmem:[%s2 + $0x8] sm:$0xff]
  %v187 = vld [vmem:[%s2 + $0x10] sm:$0xff]
  %v188 = vld [vmem:[%s2 + $0x18] sm:$0xff]
  %v189 = vld [vmem:[%s2 + $0x20] sm:$0xff]
  %v190 = vld [vmem:[%s2 + $0x28] sm:$0xff]
  %v191 = vld [vmem:[%s2 + $0x30] sm:$0xff]
  %v192 = vld [vmem:[%s2 + $0x38] sm:$0xff]
  %193 = vmatpush.msra.mxu0 %v183
  %194 = vmatpush.msra.mxu0 %v180
  %195 = vmatpush.msra.mxu0 %v177
  %196 = vmatpush.msra.mxu0 %v174
  %197 = vmatpush.msra.mxu0 %v171
  %198 = vmatpush.msra.mxu0 %v168
  %199 = vmatpush.msra.mxu0 %v165
  %200 = vmatpush.msra.mxu0 %v162
  %201 = vmatpush.msra.mxu0 %v159
  %202 = vmatpush.msra.mxu0 %v156
  %203 = vmatpush.msra.mxu0 %v153
  %204 = vmatpush.msra.mxu0 %v150
  %205 = vmatpush.msra.mxu0 %v147
  %206 = vmatpush.msra.mxu0 %v144
  %207 = vmatpush.msra.mxu0 %v141
  %208 = vmatpush.msra.mxu0 %v138
  %209 = vmatmul.f32.gmra.mxu0 %v185
  %v210 = vpop.f32.mrf.mxu0
  %v211 = vadd.f32 0.0, %v210
  %212 = vmatmul.f32.gmra.mxu0 %v186
  %v213 = vpop.f32.mrf.mxu0
  %v214 = vadd.f32 0.0, %v213
  %215 = vmatmul.f32.gmra.mxu0 %v187
  %v216 = vpop.f32.mrf.mxu0
  %v217 = vadd.f32 0.0, %v216
  %218 = vmatmul.f32.gmra.mxu0 %v188
  %v219 = vpop.f32.mrf.mxu0
  %v220 = vadd.f32 0.0, %v219
  %221 = vmatmul.f32.gmra.mxu0 %v189
  %v222 = vpop.f32.mrf.mxu0
  %v223 = vadd.f32 0.0, %v222
  %224 = vmatmul.f32.gmra.mxu0 %v190
  %v225 = vpop.f32.mrf.mxu0
  %v226 = vadd.f32 0.0, %v225
  %227 = vmatmul.f32.gmra.mxu0 %v191
  %v228 = vpop.f32.mrf.mxu0
  %v229 = vadd.f32 0.0, %v228
  %230 = vmatmul.f32.gmra.mxu0 %v192
  %v231 = vpop.f32.mrf.mxu0
  %v232 = vadd.f32 0.0, %v231
  %233 = vdwg.mxu0
  %v234 = vld [vmem:[%s3] sm:$0xff]
  %v235 = vld [vmem:[%s3 + $0x8] sm:$0xff]
  %v236 = vld [vmem:[%s3 + $0x10] sm:$0xff]
  %v237 = vld [vmem:[%s3 + $0x18] sm:$0xff]
  %v238 = vld [vmem:[%s3 + $0x20] sm:$0xff]
  %v239 = vld [vmem:[%s3 + $0x28] sm:$0xff]
  %v240 = vld [vmem:[%s3 + $0x30] sm:$0xff]
  %v241 = vld [vmem:[%s3 + $0x38] sm:$0xff]
  %v242 = vld [vmem:[%s3 + $0x40] sm:$0xff]
  %v243 = vld [vmem:[%s3 + $0x48] sm:$0xff]
  %v244 = vld [vmem:[%s3 + $0x50] sm:$0xff]
  %v245 = vld [vmem:[%s3 + $0x58] sm:$0xff]
  %v246 = vld [vmem:[%s3 + $0x60] sm:$0xff]
  %v247 = vld [vmem:[%s3 + $0x68] sm:$0xff]
  %v248 = vld [vmem:[%s3 + $0x70] sm:$0xff]
  %v249 = vld [vmem:[%s3 + $0x78] sm:$0xff]
  %v250 = vld [vmem:[%s4] sm:$0xff]
  %v251 = vld [vmem:[%s4 + $0x8] sm:$0xff]
  %v252 = vld [vmem:[%s4 + $0x10] sm:$0xff]
  %v253 = vld [vmem:[%s4 + $0x18] sm:$0xff]
  %v254 = vld [vmem:[%s4 + $0x20] sm:$0xff]
  %v255 = vld [vmem:[%s4 + $0x28] sm:$0xff]
  %v256 = vld [vmem:[%s4 + $0x30] sm:$0xff]
  %v257 = vld [vmem:[%s4 + $0x38] sm:$0xff]
  %v258 = vld [vmem:[%s4 + $0x40] sm:$0xff]
  %v259 = vld [vmem:[%s4 + $0x48] sm:$0xff]
  %v260 = vld [vmem:[%s4 + $0x50] sm:$0xff]
  %v261 = vld [vmem:[%s4 + $0x58] sm:$0xff]
  %v262 = vld [vmem:[%s4 + $0x60] sm:$0xff]
  %v263 = vld [vmem:[%s4 + $0x68] sm:$0xff]
  %v264 = vld [vmem:[%s4 + $0x70] sm:$0xff]
  %v265 = vld [vmem:[%s4 + $0x78] sm:$0xff]
  %v266 = vld [vmem:[%s5] sm:$0x1]
  %267 = vmatpush.msra.mxu0 %v265
  %268 = vmatpush.msra.mxu0 %v264
  %269 = vmatpush.msra.mxu0 %v263
  %270 = vmatpush.msra.mxu0 %v262
  %271 = vmatpush.msra.mxu0 %v261
  %272 = vmatpush.msra.mxu0 %v260
  %273 = vmatpush.msra.mxu0 %v259
  %274 = vmatpush.msra.mxu0 %v258
  %275 = vmatpush.msra.mxu0 %v257
  %276 = vmatpush.msra.mxu0 %v256
  %277 = vmatpush.msra.mxu0 %v255
  %278 = vmatpush.msra.mxu0 %v254
  %279 = vmatpush.msra.mxu0 %v253
  %280 = vmatpush.msra.mxu0 %v252
  %281 = vmatpush.msra.mxu0 %v251
  %282 = vmatpush.msra.mxu0 %v250
  %283 = vmatmul.f32.gmra.mxu0 %v211
  %v284 = vpop.f32.mrf.mxu0
  %v285 = vadd.f32 0.0, %v284
  %286 = vmatmul.f32.gmra.mxu0 %v214
  %v287 = vpop.f32.mrf.mxu0
  %v288 = vadd.f32 0.0, %v287
  %289 = vmatmul.f32.gmra.mxu0 %v217
  %v290 = vpop.f32.mrf.mxu0
  %v291 = vadd.f32 0.0, %v290
  %292 = vmatmul.f32.gmra.mxu0 %v220
  %v293 = vpop.f32.mrf.mxu0
  %v294 = vadd.f32 0.0, %v293
  %295 = vmatmul.f32.gmra.mxu0 %v223
  %v296 = vpop.f32.mrf.mxu0
  %v297 = vadd.f32 0.0, %v296
  %298 = vmatmul.f32.gmra.mxu0 %v226
  %v299 = vpop.f32.mrf.mxu0
  %v300 = vadd.f32 0.0, %v299
  %301 = vmatmul.f32.gmra.mxu0 %v229
  %v302 = vpop.f32.mrf.mxu0
  %v303 = vadd.f32 0.0, %v302
  %304 = vmatmul.f32.gmra.mxu0 %v232
  %v305 = vpop.f32.mrf.mxu0
  %v306 = vadd.f32 0.0, %v305
  %307 = vdwg.mxu0
  %308 = vmatpush.msra.mxu0 %v249
  %309 = vmatpush.msra.mxu0 %v248
  %310 = vmatpush.msra.mxu0 %v247
  %311 = vmatpush.msra.mxu0 %v246
  %312 = vmatpush.msra.mxu0 %v245
  %313 = vmatpush.msra.mxu0 %v244
  %314 = vmatpush.msra.mxu0 %v243
  %315 = vmatpush.msra.mxu0 %v242
  %316 = vmatpush.msra.mxu0 %v241
  %317 = vmatpush.msra.mxu0 %v240
  %318 = vmatpush.msra.mxu0 %v239
  %319 = vmatpush.msra.mxu0 %v238
  %320 = vmatpush.msra.mxu0 %v237
  %321 = vmatpush.msra.mxu0 %v236
  %322 = vmatpush.msra.mxu0 %v235
  %323 = vmatpush.msra.mxu0 %v234
  %324 = vmatmul.f32.gmra.mxu0 %v23
  %v325 = vpop.f32.mrf.mxu0
  %v326 = vadd.f32 %v285, %v325
  %327 = vmatmul.f32.gmra.mxu0 %v24
  %v328 = vpop.f32.mrf.mxu0
  %v329 = vadd.f32 %v288, %v328
  %330 = vmatmul.f32.gmra.mxu0 %v25
  %v331 = vpop.f32.mrf.mxu0
  %v332 = vadd.f32 %v291, %v331
  %333 = vmatmul.f32.gmra.mxu0 %v26
  %v334 = vpop.f32.mrf.mxu0
  %v335 = vadd.f32 %v294, %v334
  %336 = vmatmul.f32.gmra.mxu0 %v27
  %v337 = vpop.f32.mrf.mxu0
  %v338 = vadd.f32 %v297, %v337
  %339 = vmatmul.f32.gmra.mxu0 %v28
  %v340 = vpop.f32.mrf.mxu0
  %v341 = vadd.f32 %v300, %v340
  %342 = vmatmul.f32.gmra.mxu0 %v29
  %v343 = vpop.f32.mrf.mxu0
  %v344 = vadd.f32 %v303, %v343
  %345 = vmatmul.f32.gmra.mxu0 %v30
  %v346 = vpop.f32.mrf.mxu0
  %v347 = vadd.f32 %v306, %v346
  %348 = vdwg.mxu0
  %v350 = vperm.slane %v266, 0
  %v352 = vadd.f32 %v326, %v350
  %v353 = vadd.f32 %v329, %v350
  %v354 = vadd.f32 %v332, %v350
  %v355 = vadd.f32 %v335, %v350
  %v356 = vadd.f32 %v338, %v350
  %v357 = vadd.f32 %v341, %v350
  %v358 = vadd.f32 %v344, %v350
  %v359 = vadd.f32 %v347, %v350
  %360 = vmatpush.msra.mxu0 %v265
  %361 = vmatpush.msra.mxu0 %v264
  %362 = vmatpush.msra.mxu0 %v263
  %363 = vmatpush.msra.mxu0 %v262
  %364 = vmatpush.msra.mxu0 %v261
  %365 = vmatpush.msra.mxu0 %v260
  %366 = vmatpush.msra.mxu0 %v259
  %367 = vmatpush.msra.mxu0 %v258
  %368 = vmatpush.msra.mxu0 %v257
  %369 = vmatpush.msra.mxu0 %v256
  %370 = vmatpush.msra.mxu0 %v255
  %371 = vmatpush.msra.mxu0 %v254
  %372 = vmatpush.msra.mxu0 %v253
  %373 = vmatpush.msra.mxu0 %v252
  %374 = vmatpush.msra.mxu0 %v251
  %375 = vmatpush.msra.mxu0 %v250
  %376 = vmatmul.f32.gmra.mxu0 %v23
  %v377 = vpop.f32.mrf.mxu0
  %v378 = vadd.f32 0.0, %v377
  %379 = vmatmul.f32.gmra.mxu0 %v24
  %v380 = vpop.f32.mrf.mxu0
  %v381 = vadd.f32 0.0, %v380
  %382 = vmatmul.f32.gmra.mxu0 %v25
  %v383 = vpop.f32.mrf.mxu0
  %v384 = vadd.f32 0.0, %v383
  %385 = vmatmul.f32.gmra.mxu0 %v26
  %v386 = vpop.f32.mrf.mxu0
  %v387 = vadd.f32 0.0, %v386
  %388 = vmatmul.f32.gmra.mxu0 %v27
  %v389 = vpop.f32.mrf.mxu0
  %v390 = vadd.f32 0.0, %v389
  %391 = vmatmul.f32.gmra.mxu0 %v28
  %v392 = vpop.f32.mrf.mxu0
  %v393 = vadd.f32 0.0, %v392
  %394 = vmatmul.f32.gmra.mxu0 %v29
  %v395 = vpop.f32.mrf.mxu0
  %v396 = vadd.f32 0.0, %v395
  %397 = vmatmul.f32.gmra.mxu0 %v30
  %v398 = vpop.f32.mrf.mxu0
  %v399 = vadd.f32 0.0, %v398
  %400 = vdwg.mxu0
  %401 = vmatpush.msra.mxu0 %v249
  %402 = vmatpush.msra.mxu0 %v248
  %403 = vmatpush.msra.mxu0 %v247
  %404 = vmatpush.msra.mxu0 %v246
  %405 = vmatpush.msra.mxu0 %v245
  %406 = vmatpush.msra.mxu0 %v244
  %407 = vmatpush.msra.mxu0 %v243
  %408 = vmatpush.msra.mxu0 %v242
  %409 = vmatpush.msra.mxu0 %v241
  %410 = vmatpush.msra.mxu0 %v240
  %411 = vmatpush.msra.mxu0 %v239
  %412 = vmatpush.msra.mxu0 %v238
  %413 = vmatpush.msra.mxu0 %v237
  %414 = vmatpush.msra.mxu0 %v236
  %415 = vmatpush.msra.mxu0 %v235
  %416 = vmatpush.msra.mxu0 %v234
  %417 = vmatmul.f32.gmra.mxu0 %v211
  %v418 = vpop.f32.mrf.mxu0
  %v419 = vadd.f32 %v378, %v418
  %420 = vmatmul.f32.gmra.mxu0 %v214
  %v421 = vpop.f32.mrf.mxu0
  %v422 = vadd.f32 %v381, %v421
  %423 = vmatmul.f32.gmra.mxu0 %v217
  %v424 = vpop.f32.mrf.mxu0
  %v425 = vadd.f32 %v384, %v424
  %426 = vmatmul.f32.gmra.mxu0 %v220
  %v427 = vpop.f32.mrf.mxu0
  %v428 = vadd.f32 %v387, %v427
  %429 = vmatmul.f32.gmra.mxu0 %v223
  %v430 = vpop.f32.mrf.mxu0
  %v431 = vadd.f32 %v390, %v430
  %432 = vmatmul.f32.gmra.mxu0 %v226
  %v433 = vpop.f32.mrf.mxu0
  %v434 = vadd.f32 %v393, %v433
  %435 = vmatmul.f32.gmra.mxu0 %v229
  %v436 = vpop.f32.mrf.mxu0
  %v437 = vadd.f32 %v396, %v436
  %438 = vmatmul.f32.gmra.mxu0 %v232
  %v439 = vpop.f32.mrf.mxu0
  %v440 = vadd.f32 %v399, %v439
  %441 = vdwg.mxu0
  %v442 = vadd.f32 %v419, %v350
  %v443 = vadd.f32 %v422, %v350
  %v444 = vadd.f32 %v425, %v350
  %v445 = vadd.f32 %v428, %v350
  %v446 = vadd.f32 %v431, %v350
  %v447 = vadd.f32 %v434, %v350
  %v448 = vadd.f32 %v437, %v350
  %v449 = vadd.f32 %v440, %v350
  %450 = vst [vmem:[%s6] sm:$0xff] %v352
  %451 = vst [vmem:[%s6 + $0x8] sm:$0xff] %v353
  %452 = vst [vmem:[%s6 + $0x10] sm:$0xff] %v354
  %453 = vst [vmem:[%s6 + $0x18] sm:$0xff] %v355
  %454 = vst [vmem:[%s6 + $0x20] sm:$0xff] %v356
  %455 = vst [vmem:[%s6 + $0x28] sm:$0xff] %v357
  %456 = vst [vmem:[%s6 + $0x30] sm:$0xff] %v358
  %457 = vst [vmem:[%s6 + $0x38] sm:$0xff] %v359
  %458 = vst [vmem:[%s6 + $0x40] sm:$0xff] %v442
  %459 = vst [vmem:[%s6 + $0x48] sm:$0xff] %v443
  %460 = vst [vmem:[%s6 + $0x50] sm:$0xff] %v444
  %461 = vst [vmem:[%s6 + $0x58] sm:$0xff] %v445
  %462 = vst [vmem:[%s6 + $0x60] sm:$0xff] %v446
  %463 = vst [vmem:[%s6 + $0x68] sm:$0xff] %v447
  %464 = vst [vmem:[%s6 + $0x70] sm:$0xff] %v448
  %465 = vst [vmem:[%s6 + $0x78] sm:$0xff] %v449
  // Predicated region
  $region26: #{gcn_forward.9} parent=0 // pred_check
    _
  $region27: #{gcn_forward.9} parent=0 // pred_check_branch
    %467 = sbr.rel (0) target = $region29
  $region28: #{gcn_forward.9} parent=0 // pred_region
    _
  $region29: #{gcn_forward.9} parent=0 // pred_fallthru
    _
  // Predicated region
  $region30: #{gcn_forward.9} parent=0 // pred_check
    _
  $region31: #{gcn_forward.9} parent=0 // pred_check_branch
    %469 = sbr.rel (0) target = $region33
  $region32: #{gcn_forward.9} parent=0 // pred_region
    _
  $region33: #{gcn_forward.9} parent=0 // pred_fallthru
    _

</llo_original>
